<compile_context>
chip_gen: v6e
topology: v6e:2x2x1
jax: 0.10.0
libtpu: 0.0.40
codegen_flags: <defaults>
</compile_context>

<pallas_src>
import functools

import jax
import jax.numpy as jnp
from jax import lax
from jax.experimental import pallas as pl
from jax.experimental.pallas import tpu as pltpu

LUNG_OPACITY_IDX = 16   # xrv.datasets.default_pathologies.index('Lung Opacity')
NUM_PATHOLOGIES = 18    # len(xrv.datasets.default_pathologies)
THETA_GEO = (0.8705248236656189, 3.4137437)   # theta_bias_geographic_extent
THETA_OPA = (0.5484423041343689, 2.5535977)   # theta_bias_opacity
# NOTE: PyTorch carries the theta constants as float64; we compute in float32
# (difference is ~1e-7 and then clamped).
LANE = 128


def _round_up(v, m):
    return ((v + m - 1) // m) * m


def init_params(key, c_in=1, c_feat=32):
    k1, k2, k3, k4 = jax.random.split(key, 4)
    return {
        "w_conv": jax.random.normal(k1, (9 * c_in, c_feat), jnp.float32) * 0.1,
        "b_conv": jax.random.normal(k2, (1, c_feat), jnp.float32) * 0.01,
        "w_cls":  jax.random.normal(k3, (c_feat, NUM_PATHOLOGIES), jnp.float32) * 0.1,
        "b_cls":  jax.random.normal(k4, (1, NUM_PATHOLOGIES), jnp.float32) * 0.01,
    }


# ---------------------------------------------------------------------------
# Fused kernel.  grid = (N,): one grid step per image.
#   x_ref     : (1, C, H+2, W+2) bf16   padded image, resident in VMEM
#   w2_ref    : (CF_PAD, KP)     bf16   conv weights, k = dj*3C + c*3 + di
#   bconv_ref : (CF_PAD, 1)      f32    conv bias (column form)
#   wcls_ref  : (CF_PAD, NP_PAD) f32    classifier weights
#   bcls_ref  : (1, NP_PAD)      f32    classifier bias
#   feats_ref : (1, 1, CF_PAD)   f32    pooled features (lane-dense row)
#   preds_ref : (1, 1, NP_PAD)   f32    preds row, geo/opa packed in spare lanes
#   pool_ref  : (CF_PAD, 1)      f32    VMEM scratch pooled-sum accumulator
# ---------------------------------------------------------------------------
def _fused_kernel(x_ref, w2_ref, bconv_ref, wcls_ref, bcls_ref,
                  feats_ref, preds_ref, pool_ref,
                  *, C, H, W, TR, KP, CF_PAD, NP_PAD):
    # Fresh pooled-sum accumulator for this image (scratch persists across
    # grid steps, so zero it unconditionally at the top of every step).
    pool_ref[...] = jnp.zeros_like(pool_ref)

    # Loaded once per image, reused by every row matmul (hoisted out of loop).
    w2 = w2_ref[...]                 # (CF_PAD, KP) bf16
    bconv = bconv_ref[...]           # (CF_PAD, 1)  f32
    kpad = KP - 9 * C
    zpad = jnp.zeros((kpad, W), jnp.bfloat16) if kpad > 0 else None

    num_tiles = H // TR

    def tile_body(t, carry):
        row0 = pl.multiple_of(t * TR, TR)
        # One slab load per row tile: (C, TR+2, W+2) bf16 (no cast; the MXU
        # consumes bf16 directly).
        slab = x_ref[0, :, pl.ds(row0, TR + 2), :]
        tile_sum = jnp.zeros((CF_PAD, 1), jnp.float32)
        for r in range(TR):                       # static unroll (TR <= 8)
            # Assemble the 3x3 im2col RHS for this output row from three
            # static slices of the slab; row order k = dj*3C + c*3 + di.
            pieces = [slab[:, r:r + 3, dj:dj + W].reshape(3 * C, W)
                      for dj in range(3)]
            if zpad is not None:
                pieces.append(zpad)               # pad K up to a sublane multiple
            rhs = jnp.concatenate(pieces, axis=0)             # (KP, W) bf16
            conv = jnp.dot(w2, rhs,
                           preferred_element_type=jnp.float32)  # (CF_PAD, W)
            act = jnp.maximum(conv + bconv, 0.0)               # F.relu
            # Immediate lane-reduce: only one row's conv output is ever live.
            tile_sum = tile_sum + jnp.sum(act, axis=1, keepdims=True)
        pool_ref[...] += tile_sum
        return carry

    lax.fori_loop(0, num_tiles, tile_body, 0)

    # ---- epilogue: pool, classifier, severity scalars ----------------------
    pooled_col = pool_ref[...] * (1.0 / float(H * W))          # adaptive_avg_pool2d
    # Column -> lane-dense row using only iota/where/sum (transpose-free).
    rr = lax.broadcasted_iota(jnp.int32, (CF_PAD, CF_PAD), 0)
    cc = lax.broadcasted_iota(jnp.int32, (CF_PAD, CF_PAD), 1)
    pool_row = jnp.sum(jnp.where(rr == cc, pooled_col, 0.0),
                       axis=0, keepdims=True)                  # (1, CF_PAD)

    feats_ref[...] = pool_row.reshape(1, 1, CF_PAD)

    preds = jnp.dot(pool_row, wcls_ref[...],
                    preferred_element_type=jnp.float32) + bcls_ref[...]
    pred = preds[0, LUNG_OPACITY_IDX]
    geo = jnp.clip(pred * THETA_GEO[0] + THETA_GEO[1], 0.0, 8.0)
    opa = jnp.clip((pred * THETA_OPA[0] + THETA_OPA[1]) / 6.0 * 8.0, 0.0, 8.0)

    # Pack the two severity scalars into spare padded lanes of the preds row
    # (lanes 18..125 are zero padding) -> no extra tiny scalar outputs.
    lane = lax.broadcasted_iota(jnp.int32, (1, NP_PAD), 1)
    packed = jnp.where(lane == NP_PAD - 2, geo, preds)
    packed = jnp.where(lane == NP_PAD - 1, opa, packed)
    preds_ref[...] = packed.reshape(1, 1, NP_PAD)


# ---------------------------------------------------------------------------
# Wrapper
# ---------------------------------------------------------------------------
def pneumonia_severity_forward(x_nchw, params):
    N, C, H, W = x_nchw.shape
    c_feat = params["w_conv"].shape[-1]
    CF_PAD = _round_up(max(c_feat, 8), LANE)            # 128
    NP_PAD = _round_up(NUM_PATHOLOGIES + 2, LANE)       # 128 (+2 lanes for geo/opa)
    KP = _round_up(9 * C, 8)                            # im2col K, sublane-padded

    # Row tile: largest of {8,4,2,1} that divides H (keeps the pool mean exact).
    TR = 1
    for cand in (8, 4, 2):
        if H % cand == 0:
            TR = cand
            break

    # ---- glue: spatial zero pad, stream image as bf16, W on the lane axis --
    xp = jnp.pad(x_nchw.astype(jnp.float32),
                 ((0, 0), (0, 0), (1, 1), (1, 1))).astype(jnp.bfloat16)

    # ---- conv weights: reorder k=(di*3+dj)*C+c -> k2=dj*3C+c*3+di to match
    #      the in-kernel RHS assembly; transpose to (c_feat, 9C); pad; bf16. --
    w4 = params["w_conv"].reshape(3, 3, C, c_feat)            # (di, dj, c, f)
    w_k2 = jnp.transpose(w4, (1, 2, 0, 3)).reshape(9 * C, c_feat)
    w2 = jnp.zeros((CF_PAD, KP), jnp.float32).at[:c_feat, :9 * C].set(w_k2.T)
    w2 = w2.astype(jnp.bfloat16)

    bconv = jnp.zeros((CF_PAD, 1), jnp.float32).at[:c_feat, 0].set(params["b_conv"][0])
    wcls = jnp.zeros((CF_PAD, NP_PAD), jnp.float32).at[:c_feat, :NUM_PATHOLOGIES].set(params["w_cls"])
    bcls = jnp.zeros((1, NP_PAD), jnp.float32).at[:, :NUM_PATHOLOGIES].set(params["b_cls"])

    kernel = functools.partial(_fused_kernel, C=C, H=H, W=W, TR=TR, KP=KP,
                               CF_PAD=CF_PAD, NP_PAD=NP_PAD)

    # Executed-on-MXU flops (per-row (CF_PAD, KP) x (KP, W) matmuls + classifier).
    flops = N * (2 * H * W * CF_PAD * KP + 2 * CF_PAD * NP_PAD)
    bytes_accessed = (xp.size * 2 + w2.size * 2
                      + (bconv.size + wcls.size + bcls.size) * 4
                      + N * (CF_PAD + NP_PAD) * 4)

    feats_pad, preds_pad = pl.pallas_call(
        kernel,
        out_shape=(
            jax.ShapeDtypeStruct((N, 1, CF_PAD), jnp.float32),
            jax.ShapeDtypeStruct((N, 1, NP_PAD), jnp.float32),
        ),
        grid=(N,),
        in_specs=[
            # Padded image: one DMA per image, resident in VMEM for the whole
            # in-kernel row sweep; last two dims (H+2, W+2) are lane-dense.
            pl.BlockSpec((1, C, H + 2, W + 2), lambda n: (n, 0, 0, 0)),
            pl.BlockSpec((CF_PAD, KP), lambda n: (0, 0)),
            pl.BlockSpec((CF_PAD, 1), lambda n: (0, 0)),
            pl.BlockSpec((CF_PAD, NP_PAD), lambda n: (0, 0)),
            pl.BlockSpec((1, NP_PAD), lambda n: (0, 0)),
        ],
        out_specs=(
            pl.BlockSpec((1, 1, CF_PAD), lambda n: (n, 0, 0)),
            pl.BlockSpec((1, 1, NP_PAD), lambda n: (n, 0, 0)),
        ),
        scratch_shapes=[pltpu.VMEM((CF_PAD, 1), jnp.float32)],
        compiler_params=pltpu.CompilerParams(
            dimension_semantics=("parallel",),
            vmem_limit_bytes=32 * 1024 * 1024),
        cost_estimate=pl.CostEstimate(flops=flops, transcendentals=0,
                                      bytes_accessed=bytes_accessed),
    )(xp, w2, bconv, wcls, bcls)

    return {
        "feats": feats_pad[:, 0, :c_feat],                    # (N, C_feat)
        "preds": preds_pad[:, 0, :NUM_PATHOLOGIES],           # (N, 18)
        "geographic_extent": preds_pad[0, 0, NP_PAD - 2],     # scalar in [0, 8]
        "opacity": preds_pad[0, 0, NP_PAD - 1],               # scalar in [0, 8]
    }


if __name__ == "__main__":
    key = jax.random.PRNGKey(0)
    k_x, k_p = jax.random.split(key)

    # xrv DenseNet takes single-channel chest x-rays (NCHW); small test shape.
    x = jax.random.normal(k_x, (2, 1, 16, 16), jnp.float32)
    params = init_params(k_p, c_in=1, c_feat=32)

    out = jax.jit(pneumonia_severity_forward)(x, params)
    out = jax.block_until_ready(out)

    assert out["feats"].shape == (2, 32)
    assert out["preds"].shape == (2, NUM_PATHOLOGIES)
    assert out["geographic_extent"].shape == ()
    assert out["opacity"].shape == ()
    assert bool(jnp.isfinite(out["feats"]).all())
    assert bool(jnp.isfinite(out["preds"]).all())
    assert 0.0 <= float(out["geographic_extent"]) <= 8.0
    assert 0.0 <= float(out["opacity"]) <= 8.0
    print("KERNEL_OK")
</pallas_src>

<mosaic_0001>
module attributes {stable_mosaic.version = 11 : i64} {
  func.func @_fused_kernel(%arg0: i32, %arg1: memref<1x1x18x18xbf16, #tpu.memory_space<vmem>>, %arg2: memref<128x16xbf16, #tpu.memory_space<vmem>>, %arg3: memref<128x1xf32, #tpu.memory_space<vmem>>, %arg4: memref<128x128xf32, #tpu.memory_space<vmem>>, %arg5: memref<1x128xf32, #tpu.memory_space<vmem>>, %arg6: memref<1x1x128xf32, #tpu.memory_space<vmem>>, %arg7: memref<1x1x128xf32, #tpu.memory_space<vmem>>, %arg8: memref<128x1xf32, #tpu.memory_space<vmem>>) attributes {dimension_semantics = [#tpu.dimension_semantics<parallel>], iteration_bounds = array<i64: 2>, scalar_prefetch = 0 : i64, scratch_operands = 1 : i64, tpu.core_type = #tpu.core_type<tc>, window_params = [{transform_indices = @transform_0, window_bounds = array<i64: 1, 1, 18, 18>}, {pipeline_mode = #tpu.pipeline_mode<synchronous>, transform_indices = @transform_1, window_bounds = array<i64: 128, 16>}, {pipeline_mode = #tpu.pipeline_mode<synchronous>, transform_indices = @transform_2, window_bounds = array<i64: 128, 1>}, {pipeline_mode = #tpu.pipeline_mode<synchronous>, transform_indices = @transform_3, window_bounds = array<i64: 128, 128>}, {pipeline_mode = #tpu.pipeline_mode<synchronous>, transform_indices = @transform_4, window_bounds = array<i64: 1, 128>}, {transform_indices = @transform_5, window_bounds = array<i64: 1, 1, 128>}, {transform_indices = @transform_6, window_bounds = array<i64: 1, 1, 128>}]} {
    %cst = arith.constant 0.000000e+00 : f32
    %0 = vector.broadcast %cst : f32 to vector<128x1xf32>
    %c0 = arith.constant 0 : index
    %c0_0 = arith.constant 0 : index
    %1 = vector.load %arg8[%c0, %c0_0] : memref<128x1xf32, #tpu.memory_space<vmem>>, vector<128x1xf32>
    tpu.vector_store %arg8[%c0, %c0_0], %0 {strides = array<i32>} : memref<128x1xf32, #tpu.memory_space<vmem>>, vector<128x1xf32>,
    %c0_1 = arith.constant 0 : index
    %c0_2 = arith.constant 0 : index
    %2 = vector.load %arg2[%c0_1, %c0_2] : memref<128x16xbf16, #tpu.memory_space<vmem>>, vector<128x16xbf16>
    %c0_3 = arith.constant 0 : index
    %c0_4 = arith.constant 0 : index
    %3 = vector.load %arg3[%c0_3, %c0_4] : memref<128x1xf32, #tpu.memory_space<vmem>>, vector<128x1xf32>
    %cst_5 = arith.constant 0.000000e+00 : bf16
    %4 = vector.broadcast %cst_5 : bf16 to vector<7x16xbf16>
    %c0_i32 = arith.constant 0 : i32
    %c2_i32 = arith.constant 2 : i32
    %5 = arith.addi %c0_i32, %c2_i32 : i32
    %c1_i32 = arith.constant 1 : i32
    scf.for %arg9 = %c0_i32 to %5 step %c1_i32  : i32 {
      %c8_i32 = arith.constant 8 : i32
      %47 = arith.muli %arg9, %c8_i32 : i32
      %48 = tpu.assume_multiple %47, 8 : i32
      %c0_33 = arith.constant 0 : index
      %c0_34 = arith.constant 0 : index
      %49 = arith.index_cast %48 : i32 to index
      %c0_35 = arith.constant 0 : index
      %50 = vector.load %arg1[%c0_33, %c0_34, %49, %c0_35] : memref<1x1x18x18xbf16, #tpu.memory_space<vmem>>, vector<1x1x10x18xbf16>
      %51 = vector.shape_cast %50 : vector<1x1x10x18xbf16> to vector<1x10x18xbf16>
      %cst_36 = arith.constant 0.000000e+00 : f32
      %52 = vector.broadcast %cst_36 : f32 to vector<128x1xf32>
      %53 = vector.extract_strided_slice %51 {offsets = [0, 0, 0], sizes = [1, 3, 16], strides = [1, 1, 1]} : vector<1x10x18xbf16> to vector<1x3x16xbf16>
      %54 = vector.shape_cast %53 : vector<1x3x16xbf16> to vector<3x16xbf16>
      %55 = vector.extract_strided_slice %51 {offsets = [0, 0, 1], sizes = [1, 3, 16], strides = [1, 1, 1]} : vector<1x10x18xbf16> to vector<1x3x16xbf16>
      %56 = vector.shape_cast %55 : vector<1x3x16xbf16> to vector<3x16xbf16>
      %57 = vector.extract_strided_slice %51 {offsets = [0, 0, 2], sizes = [1, 3, 16], strides = [1, 1, 1]} : vector<1x10x18xbf16> to vector<1x3x16xbf16>
      %58 = vector.shape_cast %57 : vector<1x3x16xbf16> to vector<3x16xbf16>
      %59 = tpu.concatenate %54, %56, %58, %4 in 0 : vector<3x16xbf16>, vector<3x16xbf16>, vector<3x16xbf16>, vector<7x16xbf16> -> vector<16x16xbf16>
      %cst_37 = arith.constant dense<0.000000e+00> : vector<128x16xf32>
      %60 = tpu.matmul %2, %59, %cst_37 {dimension_numbers = #tpu.dot_dimension_numbers<[1], [0], [0], [1], [0, 0, 1, 1], [], []>} : vector<128x16xbf16>, vector<16x16xbf16>, vector<128x16xf32> -> vector<128x16xf32>
      %61 = vector.broadcast %3 : vector<128x1xf32> to vector<128x16xf32>
      %62 = arith.addf %60, %61 : vector<128x16xf32>
      %cst_38 = arith.constant 0.000000e+00 : f32
      %63 = vector.broadcast %cst_38 : f32 to vector<128x16xf32>
      %64 = arith.maximumf %62, %63 : vector<128x16xf32>
      %cst_39 = arith.constant dense<0.000000e+00> : vector<128xf32>
      %65 = vector.multi_reduction <add>, %64, %cst_39 [1] : vector<128x16xf32> to vector<128xf32>
      %66 = vector.shape_cast %65 : vector<128xf32> to vector<128x1xf32>
      %67 = arith.addf %52, %66 : vector<128x1xf32>
      %68 = vector.extract_strided_slice %51 {offsets = [0, 1, 0], sizes = [1, 3, 16], strides = [1, 1, 1]} : vector<1x10x18xbf16> to vector<1x3x16xbf16>
      %69 = vector.shape_cast %68 : vector<1x3x16xbf16> to vector<3x16xbf16>
      %70 = vector.extract_strided_slice %51 {offsets = [0, 1, 1], sizes = [1, 3, 16], strides = [1, 1, 1]} : vector<1x10x18xbf16> to vector<1x3x16xbf16>
      %71 = vector.shape_cast %70 : vector<1x3x16xbf16> to vector<3x16xbf16>
      %72 = vector.extract_strided_slice %51 {offsets = [0, 1, 2], sizes = [1, 3, 16], strides = [1, 1, 1]} : vector<1x10x18xbf16> to vector<1x3x16xbf16>
      %73 = vector.shape_cast %72 : vector<1x3x16xbf16> to vector<3x16xbf16>
      %74 = tpu.concatenate %69, %71, %73, %4 in 0 : vector<3x16xbf16>, vector<3x16xbf16>, vector<3x16xbf16>, vector<7x16xbf16> -> vector<16x16xbf16>
      %cst_40 = arith.constant dense<0.000000e+00> : vector<128x16xf32>
      %75 = tpu.matmul %2, %74, %cst_40 {dimension_numbers = #tpu.dot_dimension_numbers<[1], [0], [0], [1], [0, 0, 1, 1], [], []>} : vector<128x16xbf16>, vector<16x16xbf16>, vector<128x16xf32> -> vector<128x16xf32>
      %76 = vector.broadcast %3 : vector<128x1xf32> to vector<128x16xf32>
      %77 = arith.addf %75, %76 : vector<128x16xf32>
      %cst_41 = arith.constant 0.000000e+00 : f32
      %78 = vector.broadcast %cst_41 : f32 to vector<128x16xf32>
      %79 = arith.maximumf %77, %78 : vector<128x16xf32>
      %cst_42 = arith.constant dense<0.000000e+00> : vector<128xf32>
      %80 = vector.multi_reduction <add>, %79, %cst_42 [1] : vector<128x16xf32> to vector<128xf32>
      %81 = vector.shape_cast %80 : vector<128xf32> to vector<128x1xf32>
      %82 = arith.addf %67, %81 : vector<128x1xf32>
      %83 = vector.extract_strided_slice %51 {offsets = [0, 2, 0], sizes = [1, 3, 16], strides = [1, 1, 1]} : vector<1x10x18xbf16> to vector<1x3x16xbf16>
      %84 = vector.shape_cast %83 : vector<1x3x16xbf16> to vector<3x16xbf16>
      %85 = vector.extract_strided_slice %51 {offsets = [0, 2, 1], sizes = [1, 3, 16], strides = [1, 1, 1]} : vector<1x10x18xbf16> to vector<1x3x16xbf16>
      %86 = vector.shape_cast %85 : vector<1x3x16xbf16> to vector<3x16xbf16>
      %87 = vector.extract_strided_slice %51 {offsets = [0, 2, 2], sizes = [1, 3, 16], strides = [1, 1, 1]} : vector<1x10x18xbf16> to vector<1x3x16xbf16>
      %88 = vector.shape_cast %87 : vector<1x3x16xbf16> to vector<3x16xbf16>
      %89 = tpu.concatenate %84, %86, %88, %4 in 0 : vector<3x16xbf16>, vector<3x16xbf16>, vector<3x16xbf16>, vector<7x16xbf16> -> vector<16x16xbf16>
      %cst_43 = arith.constant dense<0.000000e+00> : vector<128x16xf32>
      %90 = tpu.matmul %2, %89, %cst_43 {dimension_numbers = #tpu.dot_dimension_numbers<[1], [0], [0], [1], [0, 0, 1, 1], [], []>} : vector<128x16xbf16>, vector<16x16xbf16>, vector<128x16xf32> -> vector<128x16xf32>
      %91 = vector.broadcast %3 : vector<128x1xf32> to vector<128x16xf32>
      %92 = arith.addf %90, %91 : vector<128x16xf32>
      %cst_44 = arith.constant 0.000000e+00 : f32
      %93 = vector.broadcast %cst_44 : f32 to vector<128x16xf32>
      %94 = arith.maximumf %92, %93 : vector<128x16xf32>
      %cst_45 = arith.constant dense<0.000000e+00> : vector<128xf32>
      %95 = vector.multi_reduction <add>, %94, %cst_45 [1] : vector<128x16xf32> to vector<128xf32>
      %96 = vector.shape_cast %95 : vector<128xf32> to vector<128x1xf32>
      %97 = arith.addf %82, %96 : vector<128x1xf32>
      %98 = vector.extract_strided_slice %51 {offsets = [0, 3, 0], sizes = [1, 3, 16], strides = [1, 1, 1]} : vector<1x10x18xbf16> to vector<1x3x16xbf16>
      %99 = vector.shape_cast %98 : vector<1x3x16xbf16> to vector<3x16xbf16>
      %100 = vector.extract_strided_slice %51 {offsets = [0, 3, 1], sizes = [1, 3, 16], strides = [1, 1, 1]} : vector<1x10x18xbf16> to vector<1x3x16xbf16>
      %101 = vector.shape_cast %100 : vector<1x3x16xbf16> to vector<3x16xbf16>
      %102 = vector.extract_strided_slice %51 {offsets = [0, 3, 2], sizes = [1, 3, 16], strides = [1, 1, 1]} : vector<1x10x18xbf16> to vector<1x3x16xbf16>
      %103 = vector.shape_cast %102 : vector<1x3x16xbf16> to vector<3x16xbf16>
      %104 = tpu.concatenate %99, %101, %103, %4 in 0 : vector<3x16xbf16>, vector<3x16xbf16>, vector<3x16xbf16>, vector<7x16xbf16> -> vector<16x16xbf16>
      %cst_46 = arith.constant dense<0.000000e+00> : vector<128x16xf32>
      %105 = tpu.matmul %2, %104, %cst_46 {dimension_numbers = #tpu.dot_dimension_numbers<[1], [0], [0], [1], [0, 0, 1, 1], [], []>} : vector<128x16xbf16>, vector<16x16xbf16>, vector<128x16xf32> -> vector<128x16xf32>
      %106 = vector.broadcast %3 : vector<128x1xf32> to vector<128x16xf32>
      %107 = arith.addf %105, %106 : vector<128x16xf32>
      %cst_47 = arith.constant 0.000000e+00 : f32
      %108 = vector.broadcast %cst_47 : f32 to vector<128x16xf32>
      %109 = arith.maximumf %107, %108 : vector<128x16xf32>
      %cst_48 = arith.constant dense<0.000000e+00> : vector<128xf32>
      %110 = vector.multi_reduction <add>, %109, %cst_48 [1] : vector<128x16xf32> to vector<128xf32>
      %111 = vector.shape_cast %110 : vector<128xf32> to vector<128x1xf32>
      %112 = arith.addf %97, %111 : vector<128x1xf32>
      %113 = vector.extract_strided_slice %51 {offsets = [0, 4, 0], sizes = [1, 3, 16], strides = [1, 1, 1]} : vector<1x10x18xbf16> to vector<1x3x16xbf16>
      %114 = vector.shape_cast %113 : vector<1x3x16xbf16> to vector<3x16xbf16>
      %115 = vector.extract_strided_slice %51 {offsets = [0, 4, 1], sizes = [1, 3, 16], strides = [1, 1, 1]} : vector<1x10x18xbf16> to vector<1x3x16xbf16>
      %116 = vector.shape_cast %115 : vector<1x3x16xbf16> to vector<3x16xbf16>
      %117 = vector.extract_strided_slice %51 {offsets = [0, 4, 2], sizes = [1, 3, 16], strides = [1, 1, 1]} : vector<1x10x18xbf16> to vector<1x3x16xbf16>
      %118 = vector.shape_cast %117 : vector<1x3x16xbf16> to vector<3x16xbf16>
      %119 = tpu.concatenate %114, %116, %118, %4 in 0 : vector<3x16xbf16>, vector<3x16xbf16>, vector<3x16xbf16>, vector<7x16xbf16> -> vector<16x16xbf16>
      %cst_49 = arith.constant dense<0.000000e+00> : vector<128x16xf32>
      %120 = tpu.matmul %2, %119, %cst_49 {dimension_numbers = #tpu.dot_dimension_numbers<[1], [0], [0], [1], [0, 0, 1, 1], [], []>} : vector<128x16xbf16>, vector<16x16xbf16>, vector<128x16xf32> -> vector<128x16xf32>
      %121 = vector.broadcast %3 : vector<128x1xf32> to vector<128x16xf32>
      %122 = arith.addf %120, %121 : vector<128x16xf32>
      %cst_50 = arith.constant 0.000000e+00 : f32
      %123 = vector.broadcast %cst_50 : f32 to vector<128x16xf32>
      %124 = arith.maximumf %122, %123 : vector<128x16xf32>
      %cst_51 = arith.constant dense<0.000000e+00> : vector<128xf32>
      %125 = vector.multi_reduction <add>, %124, %cst_51 [1] : vector<128x16xf32> to vector<128xf32>
      %126 = vector.shape_cast %125 : vector<128xf32> to vector<128x1xf32>
      %127 = arith.addf %112, %126 : vector<128x1xf32>
      %128 = vector.extract_strided_slice %51 {offsets = [0, 5, 0], sizes = [1, 3, 16], strides = [1, 1, 1]} : vector<1x10x18xbf16> to vector<1x3x16xbf16>
      %129 = vector.shape_cast %128 : vector<1x3x16xbf16> to vector<3x16xbf16>
      %130 = vector.extract_strided_slice %51 {offsets = [0, 5, 1], sizes = [1, 3, 16], strides = [1, 1, 1]} : vector<1x10x18xbf16> to vector<1x3x16xbf16>
      %131 = vector.shape_cast %130 : vector<1x3x16xbf16> to vector<3x16xbf16>
      %132 = vector.extract_strided_slice %51 {offsets = [0, 5, 2], sizes = [1, 3, 16], strides = [1, 1, 1]} : vector<1x10x18xbf16> to vector<1x3x16xbf16>
      %133 = vector.shape_cast %132 : vector<1x3x16xbf16> to vector<3x16xbf16>
      %134 = tpu.concatenate %129, %131, %133, %4 in 0 : vector<3x16xbf16>, vector<3x16xbf16>, vector<3x16xbf16>, vector<7x16xbf16> -> vector<16x16xbf16>
      %cst_52 = arith.constant dense<0.000000e+00> : vector<128x16xf32>
      %135 = tpu.matmul %2, %134, %cst_52 {dimension_numbers = #tpu.dot_dimension_numbers<[1], [0], [0], [1], [0, 0, 1, 1], [], []>} : vector<128x16xbf16>, vector<16x16xbf16>, vector<128x16xf32> -> vector<128x16xf32>
      %136 = vector.broadcast %3 : vector<128x1xf32> to vector<128x16xf32>
      %137 = arith.addf %135, %136 : vector<128x16xf32>
      %cst_53 = arith.constant 0.000000e+00 : f32
      %138 = vector.broadcast %cst_53 : f32 to vector<128x16xf32>
      %139 = arith.maximumf %137, %138 : vector<128x16xf32>
      %cst_54 = arith.constant dense<0.000000e+00> : vector<128xf32>
      %140 = vector.multi_reduction <add>, %139, %cst_54 [1] : vector<128x16xf32> to vector<128xf32>
      %141 = vector.shape_cast %140 : vector<128xf32> to vector<128x1xf32>
      %142 = arith.addf %127, %141 : vector<128x1xf32>
      %143 = vector.extract_strided_slice %51 {offsets = [0, 6, 0], sizes = [1, 3, 16], strides = [1, 1, 1]} : vector<1x10x18xbf16> to vector<1x3x16xbf16>
      %144 = vector.shape_cast %143 : vector<1x3x16xbf16> to vector<3x16xbf16>
      %145 = vector.extract_strided_slice %51 {offsets = [0, 6, 1], sizes = [1, 3, 16], strides = [1, 1, 1]} : vector<1x10x18xbf16> to vector<1x3x16xbf16>
      %146 = vector.shape_cast %145 : vector<1x3x16xbf16> to vector<3x16xbf16>
      %147 = vector.extract_strided_slice %51 {offsets = [0, 6, 2], sizes = [1, 3, 16], strides = [1, 1, 1]} : vector<1x10x18xbf16> to vector<1x3x16xbf16>
      %148 = vector.shape_cast %147 : vector<1x3x16xbf16> to vector<3x16xbf16>
      %149 = tpu.concatenate %144, %146, %148, %4 in 0 : vector<3x16xbf16>, vector<3x16xbf16>, vector<3x16xbf16>, vector<7x16xbf16> -> vector<16x16xbf16>
      %cst_55 = arith.constant dense<0.000000e+00> : vector<128x16xf32>
      %150 = tpu.matmul %2, %149, %cst_55 {dimension_numbers = #tpu.dot_dimension_numbers<[1], [0], [0], [1], [0, 0, 1, 1], [], []>} : vector<128x16xbf16>, vector<16x16xbf16>, vector<128x16xf32> -> vector<128x16xf32>
      %151 = vector.broadcast %3 : vector<128x1xf32> to vector<128x16xf32>
      %152 = arith.addf %150, %151 : vector<128x16xf32>
      %cst_56 = arith.constant 0.000000e+00 : f32
      %153 = vector.broadcast %cst_56 : f32 to vector<128x16xf32>
      %154 = arith.maximumf %152, %153 : vector<128x16xf32>
      %cst_57 = arith.constant dense<0.000000e+00> : vector<128xf32>
      %155 = vector.multi_reduction <add>, %154, %cst_57 [1] : vector<128x16xf32> to vector<128xf32>
      %156 = vector.shape_cast %155 : vector<128xf32> to vector<128x1xf32>
      %157 = arith.addf %142, %156 : vector<128x1xf32>
      %158 = vector.extract_strided_slice %51 {offsets = [0, 7, 0], sizes = [1, 3, 16], strides = [1, 1, 1]} : vector<1x10x18xbf16> to vector<1x3x16xbf16>
      %159 = vector.shape_cast %158 : vector<1x3x16xbf16> to vector<3x16xbf16>
      %160 = vector.extract_strided_slice %51 {offsets = [0, 7, 1], sizes = [1, 3, 16], strides = [1, 1, 1]} : vector<1x10x18xbf16> to vector<1x3x16xbf16>
      %161 = vector.shape_cast %160 : vector<1x3x16xbf16> to vector<3x16xbf16>
      %162 = vector.extract_strided_slice %51 {offsets = [0, 7, 2], sizes = [1, 3, 16], strides = [1, 1, 1]} : vector<1x10x18xbf16> to vector<1x3x16xbf16>
      %163 = vector.shape_cast %162 : vector<1x3x16xbf16> to vector<3x16xbf16>
      %164 = tpu.concatenate %159, %161, %163, %4 in 0 : vector<3x16xbf16>, vector<3x16xbf16>, vector<3x16xbf16>, vector<7x16xbf16> -> vector<16x16xbf16>
      %cst_58 = arith.constant dense<0.000000e+00> : vector<128x16xf32>
      %165 = tpu.matmul %2, %164, %cst_58 {dimension_numbers = #tpu.dot_dimension_numbers<[1], [0], [0], [1], [0, 0, 1, 1], [], []>} : vector<128x16xbf16>, vector<16x16xbf16>, vector<128x16xf32> -> vector<128x16xf32>
      %166 = vector.broadcast %3 : vector<128x1xf32> to vector<128x16xf32>
      %167 = arith.addf %165, %166 : vector<128x16xf32>
      %cst_59 = arith.constant 0.000000e+00 : f32
      %168 = vector.broadcast %cst_59 : f32 to vector<128x16xf32>
      %169 = arith.maximumf %167, %168 : vector<128x16xf32>
      %cst_60 = arith.constant dense<0.000000e+00> : vector<128xf32>
      %170 = vector.multi_reduction <add>, %169, %cst_60 [1] : vector<128x16xf32> to vector<128xf32>
      %171 = vector.shape_cast %170 : vector<128xf32> to vector<128x1xf32>
      %172 = arith.addf %157, %171 : vector<128x1xf32>
      %c0_61 = arith.constant 0 : index
      %c0_62 = arith.constant 0 : index
      %173 = vector.load %arg8[%c0_61, %c0_62] : memref<128x1xf32, #tpu.memory_space<vmem>>, vector<128x1xf32>
      %174 = arith.addf %173, %172 : vector<128x1xf32>
      %c0_63 = arith.constant 0 : index
      %c0_64 = arith.constant 0 : index
      %175 = vector.load %arg8[%c0_63, %c0_64] : memref<128x1xf32, #tpu.memory_space<vmem>>, vector<128x1xf32>
      tpu.vector_store %arg8[%c0_63, %c0_64], %174 {strides = array<i32>} : memref<128x1xf32, #tpu.memory_space<vmem>>, vector<128x1xf32>,
    }
    %c2_i32_6 = arith.constant 2 : i32
    %c0_7 = arith.constant 0 : index
    %c0_8 = arith.constant 0 : index
    %6 = vector.load %arg8[%c0_7, %c0_8] : memref<128x1xf32, #tpu.memory_space<vmem>>, vector<128x1xf32>
    %cst_9 = arith.constant 3.906250e-03 : f32
    %7 = vector.broadcast %cst_9 : f32 to vector<128x1xf32>
    %8 = arith.mulf %6, %7 : vector<128x1xf32>
    %9 = tpu.iota {dimensions = array<i32: 0>} : vector<128x128xi32>
    %10 = tpu.iota {dimensions = array<i32: 1>} : vector<128x128xi32>
    %11 = arith.cmpi eq, %9, %10 : vector<128x128xi32>
    %cst_10 = arith.constant 0.000000e+00 : f32
    %12 = vector.shape_cast %8 : vector<128x1xf32> to vector<128x1xf32>
    %13 = vector.broadcast %12 : vector<128x1xf32> to vector<128x128xf32>
    %14 = vector.broadcast %cst_10 : f32 to vector<128x128xf32>
    %15 = arith.select %11, %13, %14 : vector<128x128xi1>, vector<128x128xf32>
    %cst_11 = arith.constant dense<0.000000e+00> : vector<128xf32>
    %16 = vector.multi_reduction <add>, %15, %cst_11 [0] : vector<128x128xf32> to vector<128xf32>
    %17 = vector.shape_cast %16 : vector<128xf32> to vector<1x128xf32>
    %18 = vector.shape_cast %17 : vector<1x128xf32> to vector<1x1x128xf32>
    %c0_12 = arith.constant 0 : index
    %c0_13 = arith.constant 0 : index
    %c0_14 = arith.constant 0 : index
    %19 = vector.load %arg6[%c0_12, %c0_13, %c0_14] : memref<1x1x128xf32, #tpu.memory_space<vmem>>, vector<1x1x128xf32>
    tpu.vector_store %arg6[%c0_12, %c0_13, %c0_14], %18 {strides = array<i32>} : memref<1x1x128xf32, #tpu.memory_space<vmem>>, vector<1x1x128xf32>,
    %c0_15 = arith.constant 0 : index
    %c0_16 = arith.constant 0 : index
    %20 = vector.load %arg4[%c0_15, %c0_16] : memref<128x128xf32, #tpu.memory_space<vmem>>, vector<128x128xf32>
    %cst_17 = arith.constant dense<0.000000e+00> : vector<1x128xf32>
    %21 = tpu.matmul %17, %20, %cst_17 {dimension_numbers = #tpu.dot_dimension_numbers<[1], [0], [0], [1], [0, 0, 1, 1], [], []>} : vector<1x128xf32>, vector<128x128xf32>, vector<1x128xf32> -> vector<1x128xf32>
    %c0_18 = arith.constant 0 : index
    %c0_19 = arith.constant 0 : index
    %22 = vector.load %arg5[%c0_18, %c0_19] : memref<1x128xf32, #tpu.memory_space<vmem>>, vector<1x128xf32>
    %23 = arith.addf %21, %22 : vector<1x128xf32>
    %24 = vector.extract_strided_slice %23 {offsets = [0, 16], sizes = [1, 1], strides = [1, 1]} : vector<1x128xf32> to vector<1x1xf32>
    %25 = vector.extract %24[0, 0] : f32 from vector<1x1xf32>
    %cst_20 = arith.constant 0.870524823 : f32
    %26 = arith.mulf %25, %cst_20 : f32
    %cst_21 = arith.constant 3.41374373 : f32
    %27 = arith.addf %26, %cst_21 : f32
    %cst_22 = arith.constant 0.000000e+00 : f32
    %cst_23 = arith.constant 8.000000e+00 : f32
    %28 = arith.maximumf %cst_22, %27 : f32
    %29 = arith.minimumf %cst_23, %28 : f32
    %cst_24 = arith.constant 0.548442304 : f32
    %30 = arith.mulf %25, %cst_24 : f32
    %cst_25 = arith.constant 2.55359769 : f32
    %31 = arith.addf %30, %cst_25 : f32
    %cst_26 = arith.constant 6.000000e+00 : f32
    %32 = arith.divf %31, %cst_26 : f32
    %cst_27 = arith.constant 8.000000e+00 : f32
    %33 = arith.mulf %32, %cst_27 : f32
    %cst_28 = arith.constant 0.000000e+00 : f32
    %cst_29 = arith.constant 8.000000e+00 : f32
    %34 = arith.maximumf %cst_28, %33 : f32
    %35 = arith.minimumf %cst_29, %34 : f32
    %36 = tpu.iota {dimensions = array<i32: 1>} : vector<1x128xi32>
    %c126_i32 = arith.constant 126 : i32
    %37 = vector.broadcast %c126_i32 : i32 to vector<1x128xi32>
    %38 = arith.cmpi eq, %36, %37 : vector<1x128xi32>
    %39 = vector.broadcast %29 : f32 to vector<1x128xf32>
    %40 = arith.select %38, %39, %23 : vector<1x128xi1>, vector<1x128xf32>
    %c127_i32 = arith.constant 127 : i32
    %41 = vector.broadcast %c127_i32 : i32 to vector<1x128xi32>
    %42 = arith.cmpi eq, %36, %41 : vector<1x128xi32>
    %43 = vector.broadcast %35 : f32 to vector<1x128xf32>
    %44 = arith.select %42, %43, %40 : vector<1x128xi1>, vector<1x128xf32>
    %45 = vector.shape_cast %44 : vector<1x128xf32> to vector<1x1x128xf32>
    %c0_30 = arith.constant 0 : index
    %c0_31 = arith.constant 0 : index
    %c0_32 = arith.constant 0 : index
    %46 = vector.load %arg7[%c0_30, %c0_31, %c0_32] : memref<1x1x128xf32, #tpu.memory_space<vmem>>, vector<1x1x128xf32>
    tpu.vector_store %arg7[%c0_30, %c0_31, %c0_32], %45 {strides = array<i32>} : memref<1x1x128xf32, #tpu.memory_space<vmem>>, vector<1x1x128xf32>,
    return
  }
  func.func @transform_0(%arg0: i32) -> (i32, i32, i32, i32) {
    %c0_i32 = arith.constant 0 : i32
    %c0_i32_0 = arith.constant 0 : i32
    %c0_i32_1 = arith.constant 0 : i32
    %c0_i32_2 = arith.constant 0 : i32
    return %arg0, %c0_i32, %c0_i32_0, %c0_i32_1 : i32, i32, i32, i32
  }
  func.func @transform_1(%arg0: i32) -> (i32, i32) {
    %c0_i32 = arith.constant 0 : i32
    %c0_i32_0 = arith.constant 0 : i32
    %c0_i32_1 = arith.constant 0 : i32
    return %c0_i32, %c0_i32_0 : i32, i32
  }
  func.func @transform_2(%arg0: i32) -> (i32, i32) {
    %c0_i32 = arith.constant 0 : i32
    %c0_i32_0 = arith.constant 0 : i32
    %c0_i32_1 = arith.constant 0 : i32
    return %c0_i32, %c0_i32_0 : i32, i32
  }
  func.func @transform_3(%arg0: i32) -> (i32, i32) {
    %c0_i32 = arith.constant 0 : i32
    %c0_i32_0 = arith.constant 0 : i32
    %c0_i32_1 = arith.constant 0 : i32
    return %c0_i32, %c0_i32_0 : i32, i32
  }
  func.func @transform_4(%arg0: i32) -> (i32, i32) {
    %c0_i32 = arith.constant 0 : i32
    %c0_i32_0 = arith.constant 0 : i32
    %c0_i32_1 = arith.constant 0 : i32
    return %c0_i32, %c0_i32_0 : i32, i32
  }
  func.func @transform_5(%arg0: i32) -> (i32, i32, i32) {
    %c0_i32 = arith.constant 0 : i32
    %c0_i32_0 = arith.constant 0 : i32
    %c0_i32_1 = arith.constant 0 : i32
    return %arg0, %c0_i32, %c0_i32_0 : i32, i32, i32
  }
  func.func @transform_6(%arg0: i32) -> (i32, i32, i32) {
    %c0_i32 = arith.constant 0 : i32
    %c0_i32_0 = arith.constant 0 : i32
    %c0_i32_1 = arith.constant 0 : i32
    return %arg0, %c0_i32, %c0_i32_0 : i32, i32, i32
  }
}

</mosaic_0001>

<llo_original>
// kernel: pneumonia_severity_forward.1
$region0: #{pneumonia_severity_forward.1}
  #allocation0 [shape = 'u32[]', space=smem, size = 0x4, offset = 0x4, fixed_abs, tag = 'smem constant byte address 0x4 - core index']
  #allocation1 [shape = 'u32[144,128]{1,0:T(1,128)}', space=vmem, size = 0x12000, scoped, tag = 'internal scratch']
  #allocation2 [shape = 'f32[128,1]{1,0:T(8,128)}', space=vmem, size = 0x10000, scoped, tag = 'scratch operand']
  %s0 = inlined_call_operand.vmem [shape: bf16[2,1,18,18], index: 0, kind: input, shape index: {}]
  %s1 = inlined_call_operand.vmem [shape: bf16[128,16], index: 1, kind: input, shape index: {}]
  %s2 = inlined_call_operand.vmem [shape: f32[128,1], index: 2, kind: input, shape index: {}]
  %s3 = inlined_call_operand.vmem [shape: f32[128,128], index: 3, kind: input, shape index: {}]
  %s4 = inlined_call_operand.vmem [shape: f32[1,128], index: 4, kind: input, shape index: {}]
  %s5 = inlined_call_operand.hbm [shape: f32[2,1,128], index: 5, kind: output, shape index: {0}]
  %s6 = inlined_call_operand.vmem [shape: f32[2,1,128], index: 6, kind: output, shape index: {1}]
  %7 = xla_tuple %s5, %s6
  %s8 = sld [smem:[#allocation0]]
  $region68: #{pneumonia_severity_forward.1} parent=0
    _
  %s10 = ssub.s32 1, %s8
  %s11 = scalar_select 0, %s10, %s8
  $region1: #{pneumonia_severity_forward.1} parent=0
    #allocation3 [shape = 'u8[1024]{0}', space=vmem, size = 0x400, scoped, tag = 'output window, operand 0']
    #allocation4 [shape = 's32[2]{0}', space=sflag, size = 0x8, scoped, tag = 'scoped memory for pneumonia_severity_forward.1']
    %12 = vsyncpa [#allocation4], 0
    %s13 = scalar_lea.sflag [#allocation4], 1
    %14 = vsyncpa %s13, 0
    loop: start=0, step=1, limit=4
    $region2: #{pneumonia_severity_forward.1} parent=1 // loop_pre_header
      _
    $region3: #{pneumonia_severity_forward.1} parent=1 // loop_header
      %s16 = sphi 0, %s20
      %p17 = scmp.ge.s32.totalorder %s16, 4
      %s26 = sphi 0, %s28
      %s29 = sphi 0, %s26
      %s30 = sphi 0, %s29
      %s46 = sphi 0, %s30
      %s50 = sphi 0, %s50
      %s52 = sphi 0, %s50
      %s53 = sphi 0, %s52
      %s67 = sphi 0, %s53
      %s71 = sphi 0, %s71
      %s73 = sphi 0, %s71
      %s74 = sphi 0, %s73
      %s88 = sphi 0, %s74
      %s92 = sphi 0, %s92
      %s94 = sphi 0, %s92
      %s95 = sphi 0, %s94
      %s109 = sphi 0, %s95
      %s113 = sphi 0, %s113
      %s115 = sphi 0, %s113
      %s116 = sphi 0, %s115
      %s130 = sphi 0, %s116
      %s136 = sphi 0, %s138
      %s139 = sphi 0, %s136
      %s140 = sphi 0, %s139
      %s156 = sphi 0, %s140
      %s162 = sphi 0, %s164
      %s165 = sphi 0, %s162
      %s166 = sphi 0, %s165
      %s182 = sphi 0, %s166
    $region4: #{pneumonia_severity_forward.1} parent=1 // loop_header_branch
      %19 = sbr.rel (%p17) target = $region8
    $region5: #{pneumonia_severity_forward.1} parent=1 // loop_body
      %s21 = ssub.s32 %s16, 1
      %s22 = ssub.s32 %s16, 2
      %s23 = sadd.s32 %s16, 1
      %s24 = ssub.s32 %s16, %s23
      %p25 = scmp.eq.s32.totalorder %s24, 0
      %s27 = sadd.s32 %s26, 1
      %s28 = scalar_select %p25, %s26, %s27
      %p31 = pneg %p25
      %p32 = scmp.eq.s32.totalorder %s16, 1
      %p33 = por %p31, %p32
      %p34 = scmp.ne.s32.totalorder %s26, %s29
      %p35 = scmp.eq.s32.totalorder %s16, 0
      %p36 = por %p34, %p35
      %p37 = scmp.ne.s32.totalorder %s26, %s29
      %p38 = scmp.eq.s32.totalorder %s21, 1
      %p39 = por %p37, %p38
      %p40 = scmp.ne.s32.totalorder %s29, %s30
      %p41 = scmp.eq.s32.totalorder %s21, 0
      %p42 = por %p40, %p41
      %p43 = scmp.ne.s32.totalorder %s29, %s30
      %p44 = scmp.eq.s32.totalorder %s22, 1
      %p45 = por %p43, %p44
      %p47 = scmp.ne.s32.totalorder %s30, %s46
      %p48 = scmp.eq.s32.totalorder %s22, 0
      %p49 = por %p47, %p48
      %s51 = sadd.s32 %s50, 1
      %p54 = scmp.eq.s32.totalorder %s16, 1
      %p55 = scmp.ne.s32.totalorder %s50, %s52
      %p56 = scmp.eq.s32.totalorder %s16, 0
      %p57 = por %p55, %p56
      %p58 = scmp.ne.s32.totalorder %s50, %s52
      %p59 = scmp.eq.s32.totalorder %s21, 1
      %p60 = por %p58, %p59
      %p61 = scmp.ne.s32.totalorder %s52, %s53
      %p62 = scmp.eq.s32.totalorder %s21, 0
      %p63 = por %p61, %p62
      %p64 = scmp.ne.s32.totalorder %s52, %s53
      %p65 = scmp.eq.s32.totalorder %s22, 1
      %p66 = por %p64, %p65
      %p68 = scmp.ne.s32.totalorder %s53, %s67
      %p69 = scmp.eq.s32.totalorder %s22, 0
      %p70 = por %p68, %p69
      %s72 = sadd.s32 %s71, 1
      %p75 = scmp.eq.s32.totalorder %s16, 1
      %p76 = scmp.ne.s32.totalorder %s71, %s73
      %p77 = scmp.eq.s32.totalorder %s16, 0
      %p78 = por %p76, %p77
      %p79 = scmp.ne.s32.totalorder %s71, %s73
      %p80 = scmp.eq.s32.totalorder %s21, 1
      %p81 = por %p79, %p80
      %p82 = scmp.ne.s32.totalorder %s73, %s74
      %p83 = scmp.eq.s32.totalorder %s21, 0
      %p84 = por %p82, %p83
      %p85 = scmp.ne.s32.totalorder %s73, %s74
      %p86 = scmp.eq.s32.totalorder %s22, 1
      %p87 = por %p85, %p86
      %p89 = scmp.ne.s32.totalorder %s74, %s88
      %p90 = scmp.eq.s32.totalorder %s22, 0
      %p91 = por %p89, %p90
      %s93 = sadd.s32 %s92, 1
      %p96 = scmp.eq.s32.totalorder %s16, 1
      %p97 = scmp.ne.s32.totalorder %s92, %s94
      %p98 = scmp.eq.s32.totalorder %s16, 0
      %p99 = por %p97, %p98
      %p100 = scmp.ne.s32.totalorder %s92, %s94
      %p101 = scmp.eq.s32.totalorder %s21, 1
      %p102 = por %p100, %p101
      %p103 = scmp.ne.s32.totalorder %s94, %s95
      %p104 = scmp.eq.s32.totalorder %s21, 0
      %p105 = por %p103, %p104
      %p106 = scmp.ne.s32.totalorder %s94, %s95
      %p107 = scmp.eq.s32.totalorder %s22, 1
      %p108 = por %p106, %p107
      %p110 = scmp.ne.s32.totalorder %s95, %s109
      %p111 = scmp.eq.s32.totalorder %s22, 0
      %p112 = por %p110, %p111
      %s114 = sadd.s32 %s113, 1
      %p117 = scmp.eq.s32.totalorder %s16, 1
      %p118 = scmp.ne.s32.totalorder %s113, %s115
      %p119 = scmp.eq.s32.totalorder %s16, 0
      %p120 = por %p118, %p119
      %p121 = scmp.ne.s32.totalorder %s113, %s115
      %p122 = scmp.eq.s32.totalorder %s21, 1
      %p123 = por %p121, %p122
      %p124 = scmp.ne.s32.totalorder %s115, %s116
      %p125 = scmp.eq.s32.totalorder %s21, 0
      %p126 = por %p124, %p125
      %p127 = scmp.ne.s32.totalorder %s115, %s116
      %p128 = scmp.eq.s32.totalorder %s22, 1
      %p129 = por %p127, %p128
      %p131 = scmp.ne.s32.totalorder %s116, %s130
      %p132 = scmp.eq.s32.totalorder %s22, 0
      %p133 = por %p131, %p132
      %s134 = ssub.s32 %s16, %s23
      %p135 = scmp.eq.s32.totalorder %s134, 0
      %s137 = sadd.s32 %s136, 1
      %s138 = scalar_select %p135, %s136, %s137
      %p141 = pneg %p135
      %p142 = scmp.eq.s32.totalorder %s16, 1
      %p143 = por %p141, %p142
      %p144 = scmp.ne.s32.totalorder %s136, %s139
      %p145 = scmp.eq.s32.totalorder %s16, 0
      %p146 = por %p144, %p145
      %p147 = scmp.ne.s32.totalorder %s136, %s139
      %p148 = scmp.eq.s32.totalorder %s21, 1
      %p149 = por %p147, %p148
      %p150 = scmp.ne.s32.totalorder %s139, %s140
      %p151 = scmp.eq.s32.totalorder %s21, 0
      %p152 = por %p150, %p151
      %p153 = scmp.ne.s32.totalorder %s139, %s140
      %p154 = scmp.eq.s32.totalorder %s22, 1
      %p155 = por %p153, %p154
      %p157 = scmp.ne.s32.totalorder %s140, %s156
      %p158 = scmp.eq.s32.totalorder %s22, 0
      %p159 = por %p157, %p158
      %s160 = ssub.s32 %s16, %s23
      %p161 = scmp.eq.s32.totalorder %s160, 0
      %s163 = sadd.s32 %s162, 1
      %s164 = scalar_select %p161, %s162, %s163
      %p167 = pneg %p161
      %p168 = scmp.eq.s32.totalorder %s16, 1
      %p169 = por %p167, %p168
      %p170 = scmp.ne.s32.totalorder %s162, %s165
      %p171 = scmp.eq.s32.totalorder %s16, 0
      %p172 = por %p170, %p171
      %p173 = scmp.ne.s32.totalorder %s162, %s165
      %p174 = scmp.eq.s32.totalorder %s21, 1
      %p175 = por %p173, %p174
      %p176 = scmp.ne.s32.totalorder %s165, %s166
      %p177 = scmp.eq.s32.totalorder %s21, 0
      %p178 = por %p176, %p177
      %p179 = scmp.ne.s32.totalorder %s165, %s166
      %p180 = scmp.eq.s32.totalorder %s22, 1
      %p181 = por %p179, %p180
      %p183 = scmp.ne.s32.totalorder %s166, %s182
      %p184 = scmp.eq.s32.totalorder %s22, 0
      %p185 = por %p183, %p184
      %p186 = scmp.le.s32.totalorder 1, %s16
      %p187 = scmp.lt.s32.totalorder %s16, 3
      %p188 = pnand %p186, %p187
      %p189 = pneg %p188
      // Predicated region
      $region9: #{pneumonia_severity_forward.1} parent=5 // pred_check
        _
      $region10: #{pneumonia_severity_forward.1} parent=5 // pred_check_branch
        %191 = sbr.rel (%p188) target = $region12
      $region11: #{pneumonia_severity_forward.1} parent=5 // pred_region
        %s192 = ssub.s32 %s16, 1
        // Predicated region
        $region13: #{pneumonia_severity_forward.1} parent=11 // pred_check
          %p193 = pneg %p63
        $region14: #{pneumonia_severity_forward.1} parent=11 // pred_check_branch
          %195 = sbr.rel (%p193) target = $region16
        $region15: #{pneumonia_severity_forward.1} parent=11 // pred_region
          _
        $region16: #{pneumonia_severity_forward.1} parent=11 // pred_fallthru
          _
        // Predicated region
        $region17: #{pneumonia_severity_forward.1} parent=11 // pred_check
          %p196 = pneg %p84
        $region18: #{pneumonia_severity_forward.1} parent=11 // pred_check_branch
          %198 = sbr.rel (%p196) target = $region20
        $region19: #{pneumonia_severity_forward.1} parent=11 // pred_region
          _
        $region20: #{pneumonia_severity_forward.1} parent=11 // pred_fallthru
          _
        // Predicated region
        $region21: #{pneumonia_severity_forward.1} parent=11 // pred_check
          %p199 = pneg %p105
        $region22: #{pneumonia_severity_forward.1} parent=11 // pred_check_branch
          %201 = sbr.rel (%p199) target = $region24
        $region23: #{pneumonia_severity_forward.1} parent=11 // pred_region
          _
        $region24: #{pneumonia_severity_forward.1} parent=11 // pred_fallthru
          _
        // Predicated region
        $region25: #{pneumonia_severity_forward.1} parent=11 // pred_check
          %p202 = pneg %p126
        $region26: #{pneumonia_severity_forward.1} parent=11 // pred_check_branch
          %204 = sbr.rel (%p202) target = $region28
        $region27: #{pneumonia_severity_forward.1} parent=11 // pred_region
          _
        $region28: #{pneumonia_severity_forward.1} parent=11 // pred_fallthru
          _
      $region12: #{pneumonia_severity_forward.1} parent=5 // pred_fallthru
        _
      %p205 = scmp.lt.s32.totalorder %s16, 2
      // Predicated region
      $region29: #{pneumonia_severity_forward.1} parent=5 // pred_check
        %p206 = pneg %p205
      $region30: #{pneumonia_severity_forward.1} parent=5 // pred_check_branch
        %208 = sbr.rel (%p206) target = $region32
      $region31: #{pneumonia_severity_forward.1} parent=5 // pred_region
        // Predicated region
        $region33: #{pneumonia_severity_forward.1} parent=31 // pred_check
          %p209 = pneg %p36
        $region34: #{pneumonia_severity_forward.1} parent=31 // pred_check_branch
          %211 = sbr.rel (%p209) target = $region36
        $region35: #{pneumonia_severity_forward.1} parent=31 // pred_region
          %p212 = scmp.lt.s32.totalorder %s16, 1
          %s213 = scalar_select %p212, %s16, 1
          %s214 = smul.addr %s213, 3
          %s215 = smul.addr %s214, 4
          %s216 = scalar_lea.vmem %s0, %s215
        $region36: #{pneumonia_severity_forward.1} parent=31 // pred_fallthru
          _
      $region32: #{pneumonia_severity_forward.1} parent=5 // pred_fallthru
        _
      %p217 = scmp.le.s32.totalorder 1, %s16
      %p218 = scmp.lt.s32.totalorder %s16, 3
      %p219 = pnand %p217, %p218
      %p220 = pneg %p219
      // Predicated region
      $region37: #{pneumonia_severity_forward.1} parent=5 // pred_check
        _
      $region38: #{pneumonia_severity_forward.1} parent=5 // pred_check_branch
        %222 = sbr.rel (%p219) target = $region40
      $region39: #{pneumonia_severity_forward.1} parent=5 // pred_region
        %s223 = ssub.s32 %s16, 1
        %p224 = scmp.lt.s32.totalorder %s21, 1
        %s225 = scalar_select %p224, %s21, 1
        %s226 = smul.addr %s225, 3
        %s227 = smul.addr %s226, 4
        %s228 = scalar_lea.vmem %s0, %s227
        %p229 = pneg %p42
        %p230 = pneg %p39
        %p231 = pneg %p63
        %p232 = pneg %p60
        %p233 = pneg %p84
        %p234 = pneg %p81
        %p235 = pneg %p105
        %p236 = pneg %p102
        %p237 = pneg %p126
        %p238 = pneg %p123
        %p239 = pneg %p152
        %p240 = pneg %p149
        %s241 = sand.u32 %s139, 1
        %s242 = scalar_lea.sflag [#allocation4], %s241
        %s243 = sand.u32 %s139, 1
        %s244 = scalar_lea.vmem [#allocation3], %s243
        %p245 = pneg %p178
        %p246 = pneg %p175
        %p247 = scmp.lt.s32.totalorder %s21, 1
        %s248 = scalar_select %p247, %s21, 1
        %s249 = scalar_lea.vmem %s6, %s248
        %p250 = scmp.lt.s32.totalorder %s21, 1
        %s251 = scalar_select %p250, %s21, 1
        %s252 = smul.addr %s251, 3
        %s253 = smul.addr %s252, 4
        %s254 = scalar_lea.vmem %s0, %s253
        %p255 = scmp.lt.s32.totalorder %s21, 1
        %s256 = scalar_select %p255, %s21, 1
        %s257 = scalar_lea.vmem %s6, %s256
        %vm259 = vcmask 7168
        %260 = vst.msk [vmem:[#allocation2] sm:$0xff] %vm259, 0.0
        %261 = vst.msk [vmem:[#allocation2 + $0x8] sm:$0xff] %vm259, 0.0
        %262 = vst.msk [vmem:[#allocation2 + $0x10] sm:$0xff] %vm259, 0.0
        %263 = vst.msk [vmem:[#allocation2 + $0x18] sm:$0xff] %vm259, 0.0
        %264 = vst.msk [vmem:[#allocation2 + $0x20] sm:$0xff] %vm259, 0.0
        %265 = vst.msk [vmem:[#allocation2 + $0x28] sm:$0xff] %vm259, 0.0
        %266 = vst.msk [vmem:[#allocation2 + $0x30] sm:$0xff] %vm259, 0.0
        %267 = vst.msk [vmem:[#allocation2 + $0x38] sm:$0xff] %vm259, 0.0
        %268 = vst.msk [vmem:[#allocation2 + $0x40] sm:$0xff] %vm259, 0.0
        %269 = vst.msk [vmem:[#allocation2 + $0x48] sm:$0xff] %vm259, 0.0
        %270 = vst.msk [vmem:[#allocation2 + $0x50] sm:$0xff] %vm259, 0.0
        %271 = vst.msk [vmem:[#allocation2 + $0x58] sm:$0xff] %vm259, 0.0
        %272 = vst.msk [vmem:[#allocation2 + $0x60] sm:$0xff] %vm259, 0.0
        %273 = vst.msk [vmem:[#allocation2 + $0x68] sm:$0xff] %vm259, 0.0
        %274 = vst.msk [vmem:[#allocation2 + $0x70] sm:$0xff] %vm259, 0.0
        %275 = vst.msk [vmem:[#allocation2 + $0x78] sm:$0xff] %vm259, 0.0
        %v276 = vld [vmem:[%s1] sm:$0xf]
        %v277 = vld [vmem:[%s1 + $0x4] sm:$0xf]
        %v278 = vld [vmem:[%s1 + $0x8] sm:$0xf]
        %v279 = vld [vmem:[%s1 + $0xc] sm:$0xf]
        %v280 = vld [vmem:[%s1 + $0x10] sm:$0xf]
        %v281 = vld [vmem:[%s1 + $0x14] sm:$0xf]
        %v282 = vld [vmem:[%s1 + $0x18] sm:$0xf]
        %v283 = vld [vmem:[%s1 + $0x1c] sm:$0xf]
        %v284 = vld [vmem:[%s1 + $0x20] sm:$0xf]
        %v285 = vld [vmem:[%s1 + $0x24] sm:$0xf]
        %v286 = vld [vmem:[%s1 + $0x28] sm:$0xf]
        %v287 = vld [vmem:[%s1 + $0x2c] sm:$0xf]
        %v288 = vld [vmem:[%s1 + $0x30] sm:$0xf]
        %v289 = vld [vmem:[%s1 + $0x34] sm:$0xf]
        %v290 = vld [vmem:[%s1 + $0x38] sm:$0xf]
        %v291 = vld [vmem:[%s1 + $0x3c] sm:$0xf]
        %v292 = vld [vmem:[%s2] sm:$0xff]
        %v293 = vld [vmem:[%s2 + $0x8] sm:$0xff]
        %v294 = vld [vmem:[%s2 + $0x10] sm:$0xff]
        %v295 = vld [vmem:[%s2 + $0x18] sm:$0xff]
        %v296 = vld [vmem:[%s2 + $0x20] sm:$0xff]
        %v297 = vld [vmem:[%s2 + $0x28] sm:$0xff]
        %v298 = vld [vmem:[%s2 + $0x30] sm:$0xff]
        %v299 = vld [vmem:[%s2 + $0x38] sm:$0xff]
        %v300 = vld [vmem:[%s2 + $0x40] sm:$0xff]
        %v301 = vld [vmem:[%s2 + $0x48] sm:$0xff]
        %v302 = vld [vmem:[%s2 + $0x50] sm:$0xff]
        %v303 = vld [vmem:[%s2 + $0x58] sm:$0xff]
        %v304 = vld [vmem:[%s2 + $0x60] sm:$0xff]
        %v305 = vld [vmem:[%s2 + $0x68] sm:$0xff]
        %v306 = vld [vmem:[%s2 + $0x70] sm:$0xff]
        %v307 = vld [vmem:[%s2 + $0x78] sm:$0xff]
        loop: start=0, step=1, limit=2
        $region41: #{pneumonia_severity_forward.1} parent=39 // loop_pre_header
          _
        $region42: #{pneumonia_severity_forward.1} parent=39 // loop_header
          %s309 = sphi 0, %s313
          %p310 = scmp.ge.s32.totalorder %s309, 2
        $region43: #{pneumonia_severity_forward.1} parent=39 // loop_header_branch
          %312 = sbr.rel (%p310) target = $region47
        $region44: #{pneumonia_severity_forward.1} parent=39 // loop_body
          %s314 = smul.u32 %s309, 8
          %s315 = sshra.s32 %s314, 3
          %s316 = sand.u32 %s314, 7
          %s317 = smul.addr %s315, 4
          %s318 = scalar_lea.vmem %s254, %s317
          %v319 = vld [vmem:[%s318] sm:$0xf]
          %v320 = vld [vmem:[%s318 + $0x4] sm:$0x1]
          %v322 = vunpack.c.l.b16 %v319
          %v323 = vpack.c.b16 %v322, %v322
          %v325 = vshrl.u32 %v323, 16
          %v327 = vrot.slane %v325, 6
          %v328 = vshll.u32 %v323, 16
          %v330 = vrot.slane %v328, 7
          %v331 = vor.u32 %v327, %v330
          %332 = vrot.lane.b32.xlu0 %v331, 127
          %v333 = vpop.permute.xlu0 %332
          %v335 = vrot.slane %v323, 5
          %336 = vrot.lane.b32.xlu0 %v335, 126
          %v337 = vpop.permute.xlu0 %336
          %vm338 = vcmask 1041408
          %vm339 = vsmask.f32 1280
          %vm340 = vmand %vm338, %vm339
          %v341 = vsel %vm340, %v319, %v333
          %vm342 = vcmask 1042432
          %v345 = vsel %vm342, %v341, %v337
          %vm347 = vcmask 1044480
          %vm348 = vsmask.f32 4352
          %vm349 = vmand %vm347, %vm348
          %v350 = vsel %vm349, %v345, 0
          %352 = vset.pattern.permute.xlu0 0
          %353 = vperm.xlu0 %352, %v292
          %v354 = vpop.permute.xlu0 %353
          %357 = vset.pattern.permute.xlu0 0
          %358 = vperm.xlu0 %357, %v293
          %v359 = vpop.permute.xlu0 %358
          %362 = vset.pattern.permute.xlu0 0
          %363 = vperm.xlu0 %362, %v294
          %v364 = vpop.permute.xlu0 %363
          %367 = vset.pattern.permute.xlu0 0
          %368 = vperm.xlu0 %367, %v295
          %v369 = vpop.permute.xlu0 %368
          %372 = vset.pattern.permute.xlu0 0
          %373 = vperm.xlu0 %372, %v296
          %v374 = vpop.permute.xlu0 %373
          %377 = vset.pattern.permute.xlu0 0
          %378 = vperm.xlu0 %377, %v297
          %v379 = vpop.permute.xlu0 %378
          %382 = vset.pattern.permute.xlu0 0
          %383 = vperm.xlu0 %382, %v298
          %v384 = vpop.permute.xlu0 %383
          %387 = vset.pattern.permute.xlu0 0
          %388 = vperm.xlu0 %387, %v299
          %v389 = vpop.permute.xlu0 %388
          %392 = vset.pattern.permute.xlu0 0
          %393 = vperm.xlu0 %392, %v300
          %v394 = vpop.permute.xlu0 %393
          %397 = vset.pattern.permute.xlu0 0
          %398 = vperm.xlu0 %397, %v301
          %v399 = vpop.permute.xlu0 %398
          %402 = vset.pattern.permute.xlu0 0
          %403 = vperm.xlu0 %402, %v302
          %v404 = vpop.permute.xlu0 %403
          %407 = vset.pattern.permute.xlu0 0
          %408 = vperm.xlu0 %407, %v303
          %v409 = vpop.permute.xlu0 %408
          %412 = vset.pattern.permute.xlu0 0
          %413 = vperm.xlu0 %412, %v304
          %v414 = vpop.permute.xlu0 %413
          %417 = vset.pattern.permute.xlu0 0
          %418 = vperm.xlu0 %417, %v305
          %v419 = vpop.permute.xlu0 %418
          %422 = vset.pattern.permute.xlu0 0
          %423 = vperm.xlu0 %422, %v306
          %v424 = vpop.permute.xlu0 %423
          %427 = vset.pattern.permute.xlu0 0
          %428 = vperm.xlu0 %427, %v307
          %v429 = vpop.permute.xlu0 %428
          %v447 = vunpack.c.l.b16 %v276
          %v448 = vunpack.c.l.b16 %v277
          %v449 = vunpack.c.l.b16 %v278
          %v450 = vunpack.c.l.b16 %v279
          %v451 = vunpack.c.l.b16 %v280
          %v452 = vunpack.c.l.b16 %v281
          %v453 = vunpack.c.l.b16 %v282
          %v454 = vunpack.c.l.b16 %v283
          %v455 = vunpack.c.l.b16 %v284
          %v456 = vunpack.c.l.b16 %v285
          %v457 = vunpack.c.l.b16 %v286
          %v458 = vunpack.c.l.b16 %v287
          %v459 = vunpack.c.l.b16 %v288
          %v460 = vunpack.c.l.b16 %v289
          %v461 = vunpack.c.l.b16 %v290
          %v462 = vunpack.c.l.b16 %v291
          %v463 = vpack.c.b16 %v448, %v447
          %v464 = vpack.c.b16 %v450, %v449
          %v465 = vpack.c.b16 %v452, %v451
          %v466 = vpack.c.b16 %v454, %v453
          %v467 = vpack.c.b16 %v456, %v455
          %v468 = vpack.c.b16 %v458, %v457
          %v469 = vpack.c.b16 %v460, %v459
          %v470 = vpack.c.b16 %v462, %v461
          %vm471 = vcmask 130048
          %v473 = vsel %vm471, %v463, 0
          %v476 = vsel %vm471, %v464, 0
          %v479 = vsel %vm471, %v465, 0
          %v482 = vsel %vm471, %v466, 0
          %v485 = vsel %vm471, %v467, 0
          %v488 = vsel %vm471, %v468, 0
          %v491 = vsel %vm471, %v469, 0
          %v494 = vsel %vm471, %v470, 0
          %496 = vmatprep.subr.bf16.mxu0 0
          %497 = vmatpush1.bf16.msra.mxu0 0
          %498 = vmatprep.subr.bf16.mxu0 0
          %499 = vmatpush1.bf16.msra.mxu0 0
          %500 = vmatprep.subr.bf16.mxu0 0
          %501 = vmatpush1.bf16.msra.mxu0 0
          %502 = vmatprep.subr.bf16.mxu0 0
          %503 = vmatpush1.bf16.msra.mxu0 0
          %504 = vmatprep.subr.bf16.mxu0 0
          %505 = vmatpush1.bf16.msra.mxu0 0
          %506 = vmatprep.subr.bf16.mxu0 0
          %507 = vmatpush1.bf16.msra.mxu0 0
          %508 = vmatprep.subr.bf16.mxu0 0
          %509 = vmatpush1.bf16.msra.mxu0 0
          %510 = vmatprep.subr.bf16.mxu0 0
          %511 = vmatpush1.bf16.msra.mxu0 %v350
          %512 = vmatprep.subr.bf16.mxu0 0
          %513 = vmatpush2.bf16.msra.mxu0 0
          %514 = vmatprep.subr.bf16.mxu0 0
          %515 = vmatpush2.bf16.msra.mxu0 0
          %516 = vmatprep.subr.bf16.mxu0 0
          %517 = vmatpush2.bf16.msra.mxu0 0
          %518 = vmatprep.subr.bf16.mxu0 0
          %519 = vmatpush2.bf16.msra.mxu0 0
          %520 = vmatprep.subr.bf16.mxu0 0
          %521 = vmatpush2.bf16.msra.mxu0 0
          %522 = vmatprep.subr.bf16.mxu0 0
          %523 = vmatpush2.bf16.msra.mxu0 0
          %524 = vmatprep.subr.bf16.mxu0 0
          %525 = vmatpush2.bf16.msra.mxu0 0
          %526 = vmatprep.subr.bf16.mxu0 0
          %527 = vmatpush2.bf16.msra.mxu0 0
          %528 = vmatprep.mubr.bf16.mxu0 0
          %529 = vmatmul.mubr.bf16.gmra.mxu0 %v473
          %v530 = vpop.f32.mrf.mxu0
          %v531 = vadd.f32 %v354, %v530
          %v532 = vpop.f32.mrf.mxu0
          %v533 = vpop.f32.mrf.mxu0
          %v534 = vadd.f32 %v359, %v533
          %v535 = vpop.f32.mrf.mxu0
          %536 = vmatprep.mubr.bf16.mxu0 0
          %537 = vmatmul.mubr.bf16.gmra.mxu0 %v476
          %v538 = vpop.f32.mrf.mxu0
          %v539 = vadd.f32 %v364, %v538
          %v540 = vpop.f32.mrf.mxu0
          %v541 = vpop.f32.mrf.mxu0
          %v542 = vadd.f32 %v369, %v541
          %v543 = vpop.f32.mrf.mxu0
          %544 = vmatprep.mubr.bf16.mxu0 0
          %545 = vmatmul.mubr.bf16.gmra.mxu0 %v479
          %v546 = vpop.f32.mrf.mxu0
          %v547 = vadd.f32 %v374, %v546
          %v548 = vpop.f32.mrf.mxu0
          %v549 = vpop.f32.mrf.mxu0
          %v550 = vadd.f32 %v379, %v549
          %v551 = vpop.f32.mrf.mxu0
          %552 = vmatprep.mubr.bf16.mxu0 0
          %553 = vmatmul.mubr.bf16.gmra.mxu0 %v482
          %v554 = vpop.f32.mrf.mxu0
          %v555 = vadd.f32 %v384, %v554
          %v556 = vpop.f32.mrf.mxu0
          %v557 = vpop.f32.mrf.mxu0
          %v558 = vadd.f32 %v389, %v557
          %v559 = vpop.f32.mrf.mxu0
          %560 = vmatprep.mubr.bf16.mxu0 0
          %561 = vmatmul.mubr.bf16.gmra.mxu0 %v485
          %v562 = vpop.f32.mrf.mxu0
          %v563 = vadd.f32 %v394, %v562
          %v564 = vpop.f32.mrf.mxu0
          %v565 = vpop.f32.mrf.mxu0
          %v566 = vadd.f32 %v399, %v565
          %v567 = vpop.f32.mrf.mxu0
          %568 = vmatprep.mubr.bf16.mxu0 0
          %569 = vmatmul.mubr.bf16.gmra.mxu0 %v488
          %v570 = vpop.f32.mrf.mxu0
          %v571 = vadd.f32 %v404, %v570
          %v572 = vpop.f32.mrf.mxu0
          %v573 = vpop.f32.mrf.mxu0
          %v574 = vadd.f32 %v409, %v573
          %v575 = vpop.f32.mrf.mxu0
          %576 = vmatprep.mubr.bf16.mxu0 0
          %577 = vmatmul.mubr.bf16.gmra.mxu0 %v491
          %v578 = vpop.f32.mrf.mxu0
          %v579 = vadd.f32 %v414, %v578
          %v580 = vpop.f32.mrf.mxu0
          %v581 = vpop.f32.mrf.mxu0
          %v582 = vadd.f32 %v419, %v581
          %v583 = vpop.f32.mrf.mxu0
          %584 = vmatprep.mubr.bf16.mxu0 0
          %585 = vmatmul.mubr.bf16.gmra.mxu0 %v494
          %v586 = vpop.f32.mrf.mxu0
          %v587 = vadd.f32 %v424, %v586
          %v588 = vpop.f32.mrf.mxu0
          %v589 = vpop.f32.mrf.mxu0
          %v590 = vadd.f32 %v429, %v589
          %v591 = vpop.f32.mrf.mxu0
          %592 = vdwg.mxu0
          %v593 = vmax.f32 %v531, 0.0
          %v594 = vmax.f32 %v534, 0.0
          %v595 = vmax.f32 %v539, 0.0
          %v596 = vmax.f32 %v542, 0.0
          %v597 = vmax.f32 %v547, 0.0
          %v598 = vmax.f32 %v550, 0.0
          %v599 = vmax.f32 %v555, 0.0
          %v600 = vmax.f32 %v558, 0.0
          %v601 = vmax.f32 %v563, 0.0
          %v602 = vmax.f32 %v566, 0.0
          %v603 = vmax.f32 %v571, 0.0
          %v604 = vmax.f32 %v574, 0.0
          %v605 = vmax.f32 %v579, 0.0
          %v606 = vmax.f32 %v582, 0.0
          %v607 = vmax.f32 %v587, 0.0
          %v608 = vmax.f32 %v590, 0.0
          %v609 = vsel %vm471, %v593, 0.0
          %610 = vadd.xlane.f32.xlu0 %v609
          %v611 = vpop.xlane.xlu0 %610
          %v612 = vsel %vm471, %v594, 0.0
          %613 = vadd.xlane.f32.xlu0 %v612
          %v614 = vpop.xlane.xlu0 %613
          %v615 = vsel %vm471, %v595, 0.0
          %616 = vadd.xlane.f32.xlu0 %v615
          %v617 = vpop.xlane.xlu0 %616
          %v618 = vsel %vm471, %v596, 0.0
          %619 = vadd.xlane.f32.xlu0 %v618
          %v620 = vpop.xlane.xlu0 %619
          %v621 = vsel %vm471, %v597, 0.0
          %622 = vadd.xlane.f32.xlu0 %v621
          %v623 = vpop.xlane.xlu0 %622
          %v624 = vsel %vm471, %v598, 0.0
          %625 = vadd.xlane.f32.xlu0 %v624
          %v626 = vpop.xlane.xlu0 %625
          %v627 = vsel %vm471, %v599, 0.0
          %628 = vadd.xlane.f32.xlu0 %v627
          %v629 = vpop.xlane.xlu0 %628
          %v630 = vsel %vm471, %v600, 0.0
          %631 = vadd.xlane.f32.xlu0 %v630
          %v632 = vpop.xlane.xlu0 %631
          %v633 = vsel %vm471, %v601, 0.0
          %634 = vadd.xlane.f32.xlu0 %v633
          %v635 = vpop.xlane.xlu0 %634
          %v636 = vsel %vm471, %v602, 0.0
          %637 = vadd.xlane.f32.xlu0 %v636
          %v638 = vpop.xlane.xlu0 %637
          %v639 = vsel %vm471, %v603, 0.0
          %640 = vadd.xlane.f32.xlu0 %v639
          %v641 = vpop.xlane.xlu0 %640
          %v642 = vsel %vm471, %v604, 0.0
          %643 = vadd.xlane.f32.xlu0 %v642
          %v644 = vpop.xlane.xlu0 %643
          %v645 = vsel %vm471, %v605, 0.0
          %646 = vadd.xlane.f32.xlu0 %v645
          %v647 = vpop.xlane.xlu0 %646
          %v648 = vsel %vm471, %v606, 0.0
          %649 = vadd.xlane.f32.xlu0 %v648
          %v650 = vpop.xlane.xlu0 %649
          %v651 = vsel %vm471, %v607, 0.0
          %652 = vadd.xlane.f32.xlu0 %v651
          %v653 = vpop.xlane.xlu0 %652
          %v654 = vsel %vm471, %v608, 0.0
          %655 = vadd.xlane.f32.xlu0 %v654
          %v656 = vpop.xlane.xlu0 %655
          %v657 = vadd.f32 %v611, 0.0
          %v658 = vadd.f32 %v614, 0.0
          %v659 = vadd.f32 %v617, 0.0
          %v660 = vadd.f32 %v620, 0.0
          %v661 = vadd.f32 %v623, 0.0
          %v662 = vadd.f32 %v626, 0.0
          %v663 = vadd.f32 %v629, 0.0
          %v664 = vadd.f32 %v632, 0.0
          %v665 = vadd.f32 %v635, 0.0
          %v666 = vadd.f32 %v638, 0.0
          %v667 = vadd.f32 %v641, 0.0
          %v668 = vadd.f32 %v644, 0.0
          %v669 = vadd.f32 %v647, 0.0
          %v670 = vadd.f32 %v650, 0.0
          %v671 = vadd.f32 %v653, 0.0
          %v672 = vadd.f32 %v656, 0.0
          %v673 = vrot.slane %v328, 1
          %v674 = vor.u32 %v325, %v673
          %v676 = vrot.slane %v323, 7
          %677 = vrot.lane.b32.xlu0 %v676, 127
          %v678 = vpop.permute.xlu0 %677
          %v680 = vrot.slane %v325, 5
          %v681 = vrot.slane %v328, 6
          %v682 = vor.u32 %v680, %v681
          %683 = vrot.lane.b32.xlu0 %v682, 126
          %v684 = vpop.permute.xlu0 %683
          %v685 = vsel %vm340, %v674, %v678
          %v688 = vsel %vm342, %v685, %v684
          %v690 = vsel %vm349, %v688, 0
          %691 = vmatprep.subr.bf16.mxu0 0
          %692 = vmatpush1.bf16.msra.mxu0 0
          %693 = vmatprep.subr.bf16.mxu0 0
          %694 = vmatpush1.bf16.msra.mxu0 0
          %695 = vmatprep.subr.bf16.mxu0 0
          %696 = vmatpush1.bf16.msra.mxu0 0
          %697 = vmatprep.subr.bf16.mxu0 0
          %698 = vmatpush1.bf16.msra.mxu0 0
          %699 = vmatprep.subr.bf16.mxu0 0
          %700 = vmatpush1.bf16.msra.mxu0 0
          %701 = vmatprep.subr.bf16.mxu0 0
          %702 = vmatpush1.bf16.msra.mxu0 0
          %703 = vmatprep.subr.bf16.mxu0 0
          %704 = vmatpush1.bf16.msra.mxu0 0
          %705 = vmatprep.subr.bf16.mxu0 0
          %706 = vmatpush1.bf16.msra.mxu0 %v690
          %707 = vmatprep.subr.bf16.mxu0 0
          %708 = vmatpush2.bf16.msra.mxu0 0
          %709 = vmatprep.subr.bf16.mxu0 0
          %710 = vmatpush2.bf16.msra.mxu0 0
          %711 = vmatprep.subr.bf16.mxu0 0
          %712 = vmatpush2.bf16.msra.mxu0 0
          %713 = vmatprep.subr.bf16.mxu0 0
          %714 = vmatpush2.bf16.msra.mxu0 0
          %715 = vmatprep.subr.bf16.mxu0 0
          %716 = vmatpush2.bf16.msra.mxu0 0
          %717 = vmatprep.subr.bf16.mxu0 0
          %718 = vmatpush2.bf16.msra.mxu0 0
          %719 = vmatprep.subr.bf16.mxu0 0
          %720 = vmatpush2.bf16.msra.mxu0 0
          %721 = vmatprep.subr.bf16.mxu0 0
          %722 = vmatpush2.bf16.msra.mxu0 0
          %723 = vmatprep.mubr.bf16.mxu0 0
          %724 = vmatmul.mubr.bf16.gmra.mxu0 %v473
          %v725 = vpop.f32.mrf.mxu0
          %v726 = vadd.f32 %v354, %v725
          %v727 = vpop.f32.mrf.mxu0
          %v728 = vpop.f32.mrf.mxu0
          %v729 = vadd.f32 %v359, %v728
          %v730 = vpop.f32.mrf.mxu0
          %731 = vmatprep.mubr.bf16.mxu0 0
          %732 = vmatmul.mubr.bf16.gmra.mxu0 %v476
          %v733 = vpop.f32.mrf.mxu0
          %v734 = vadd.f32 %v364, %v733
          %v735 = vpop.f32.mrf.mxu0
          %v736 = vpop.f32.mrf.mxu0
          %v737 = vadd.f32 %v369, %v736
          %v738 = vpop.f32.mrf.mxu0
          %739 = vmatprep.mubr.bf16.mxu0 0
          %740 = vmatmul.mubr.bf16.gmra.mxu0 %v479
          %v741 = vpop.f32.mrf.mxu0
          %v742 = vadd.f32 %v374, %v741
          %v743 = vpop.f32.mrf.mxu0
          %v744 = vpop.f32.mrf.mxu0
          %v745 = vadd.f32 %v379, %v744
          %v746 = vpop.f32.mrf.mxu0
          %747 = vmatprep.mubr.bf16.mxu0 0
          %748 = vmatmul.mubr.bf16.gmra.mxu0 %v482
          %v749 = vpop.f32.mrf.mxu0
          %v750 = vadd.f32 %v384, %v749
          %v751 = vpop.f32.mrf.mxu0
          %v752 = vpop.f32.mrf.mxu0
          %v753 = vadd.f32 %v389, %v752
          %v754 = vpop.f32.mrf.mxu0
          %755 = vmatprep.mubr.bf16.mxu0 0
          %756 = vmatmul.mubr.bf16.gmra.mxu0 %v485
          %v757 = vpop.f32.mrf.mxu0
          %v758 = vadd.f32 %v394, %v757
          %v759 = vpop.f32.mrf.mxu0
          %v760 = vpop.f32.mrf.mxu0
          %v761 = vadd.f32 %v399, %v760
          %v762 = vpop.f32.mrf.mxu0
          %763 = vmatprep.mubr.bf16.mxu0 0
          %764 = vmatmul.mubr.bf16.gmra.mxu0 %v488
          %v765 = vpop.f32.mrf.mxu0
          %v766 = vadd.f32 %v404, %v765
          %v767 = vpop.f32.mrf.mxu0
          %v768 = vpop.f32.mrf.mxu0
          %v769 = vadd.f32 %v409, %v768
          %v770 = vpop.f32.mrf.mxu0
          %771 = vmatprep.mubr.bf16.mxu0 0
          %772 = vmatmul.mubr.bf16.gmra.mxu0 %v491
          %v773 = vpop.f32.mrf.mxu0
          %v774 = vadd.f32 %v414, %v773
          %v775 = vpop.f32.mrf.mxu0
          %v776 = vpop.f32.mrf.mxu0
          %v777 = vadd.f32 %v419, %v776
          %v778 = vpop.f32.mrf.mxu0
          %779 = vmatprep.mubr.bf16.mxu0 0
          %780 = vmatmul.mubr.bf16.gmra.mxu0 %v494
          %v781 = vpop.f32.mrf.mxu0
          %v782 = vadd.f32 %v424, %v781
          %v783 = vpop.f32.mrf.mxu0
          %v784 = vpop.f32.mrf.mxu0
          %v785 = vadd.f32 %v429, %v784
          %v786 = vpop.f32.mrf.mxu0
          %787 = vdwg.mxu0
          %v788 = vmax.f32 %v726, 0.0
          %v789 = vmax.f32 %v729, 0.0
          %v790 = vmax.f32 %v734, 0.0
          %v791 = vmax.f32 %v737, 0.0
          %v792 = vmax.f32 %v742, 0.0
          %v793 = vmax.f32 %v745, 0.0
          %v794 = vmax.f32 %v750, 0.0
          %v795 = vmax.f32 %v753, 0.0
          %v796 = vmax.f32 %v758, 0.0
          %v797 = vmax.f32 %v761, 0.0
          %v798 = vmax.f32 %v766, 0.0
          %v799 = vmax.f32 %v769, 0.0
          %v800 = vmax.f32 %v774, 0.0
          %v801 = vmax.f32 %v777, 0.0
          %v802 = vmax.f32 %v782, 0.0
          %v803 = vmax.f32 %v785, 0.0
          %v804 = vsel %vm471, %v788, 0.0
          %805 = vadd.xlane.f32.xlu0 %v804
          %v806 = vpop.xlane.xlu0 %805
          %v807 = vsel %vm471, %v789, 0.0
          %808 = vadd.xlane.f32.xlu0 %v807
          %v809 = vpop.xlane.xlu0 %808
          %v810 = vsel %vm471, %v790, 0.0
          %811 = vadd.xlane.f32.xlu0 %v810
          %v812 = vpop.xlane.xlu0 %811
          %v813 = vsel %vm471, %v791, 0.0
          %814 = vadd.xlane.f32.xlu0 %v813
          %v815 = vpop.xlane.xlu0 %814
          %v816 = vsel %vm471, %v792, 0.0
          %817 = vadd.xlane.f32.xlu0 %v816
          %v818 = vpop.xlane.xlu0 %817
          %v819 = vsel %vm471, %v793, 0.0
          %820 = vadd.xlane.f32.xlu0 %v819
          %v821 = vpop.xlane.xlu0 %820
          %v822 = vsel %vm471, %v794, 0.0
          %823 = vadd.xlane.f32.xlu0 %v822
          %v824 = vpop.xlane.xlu0 %823
          %v825 = vsel %vm471, %v795, 0.0
          %826 = vadd.xlane.f32.xlu0 %v825
          %v827 = vpop.xlane.xlu0 %826
          %v828 = vsel %vm471, %v796, 0.0
          %829 = vadd.xlane.f32.xlu0 %v828
          %v830 = vpop.xlane.xlu0 %829
          %v831 = vsel %vm471, %v797, 0.0
          %832 = vadd.xlane.f32.xlu0 %v831
          %v833 = vpop.xlane.xlu0 %832
          %v834 = vsel %vm471, %v798, 0.0
          %835 = vadd.xlane.f32.xlu0 %v834
          %v836 = vpop.xlane.xlu0 %835
          %v837 = vsel %vm471, %v799, 0.0
          %838 = vadd.xlane.f32.xlu0 %v837
          %v839 = vpop.xlane.xlu0 %838
          %v840 = vsel %vm471, %v800, 0.0
          %841 = vadd.xlane.f32.xlu0 %v840
          %v842 = vpop.xlane.xlu0 %841
          %v843 = vsel %vm471, %v801, 0.0
          %844 = vadd.xlane.f32.xlu0 %v843
          %v845 = vpop.xlane.xlu0 %844
          %v846 = vsel %vm471, %v802, 0.0
          %847 = vadd.xlane.f32.xlu0 %v846
          %v848 = vpop.xlane.xlu0 %847
          %v849 = vsel %vm471, %v803, 0.0
          %850 = vadd.xlane.f32.xlu0 %v849
          %v851 = vpop.xlane.xlu0 %850
          %v852 = vadd.f32 %v657, %v806
          %v853 = vadd.f32 %v658, %v809
          %v854 = vadd.f32 %v659, %v812
          %v855 = vadd.f32 %v660, %v815
          %v856 = vadd.f32 %v661, %v818
          %v857 = vadd.f32 %v662, %v821
          %v858 = vadd.f32 %v663, %v824
          %v859 = vadd.f32 %v664, %v827
          %v860 = vadd.f32 %v665, %v830
          %v861 = vadd.f32 %v666, %v833
          %v862 = vadd.f32 %v667, %v836
          %v863 = vadd.f32 %v668, %v839
          %v864 = vadd.f32 %v669, %v842
          %v865 = vadd.f32 %v670, %v845
          %v866 = vadd.f32 %v671, %v848
          %v867 = vadd.f32 %v672, %v851
          %v868 = vrot.slane %v323, 1
          %v870 = vrot.slane %v325, 7
          %v871 = vor.u32 %v870, %v328
          %872 = vrot.lane.b32.xlu0 %v871, 127
          %v873 = vpop.permute.xlu0 %872
          %v875 = vrot.slane %v323, 6
          %876 = vrot.lane.b32.xlu0 %v875, 126
          %v877 = vpop.permute.xlu0 %876
          %v878 = vsel %vm340, %v868, %v873
          %v881 = vsel %vm342, %v878, %v877
          %v883 = vsel %vm349, %v881, 0
          %884 = vmatprep.subr.bf16.mxu0 0
          %885 = vmatpush1.bf16.msra.mxu0 0
          %886 = vmatprep.subr.bf16.mxu0 0
          %887 = vmatpush1.bf16.msra.mxu0 0
          %888 = vmatprep.subr.bf16.mxu0 0
          %889 = vmatpush1.bf16.msra.mxu0 0
          %890 = vmatprep.subr.bf16.mxu0 0
          %891 = vmatpush1.bf16.msra.mxu0 0
          %892 = vmatprep.subr.bf16.mxu0 0
          %893 = vmatpush1.bf16.msra.mxu0 0
          %894 = vmatprep.subr.bf16.mxu0 0
          %895 = vmatpush1.bf16.msra.mxu0 0
          %896 = vmatprep.subr.bf16.mxu0 0
          %897 = vmatpush1.bf16.msra.mxu0 0
          %898 = vmatprep.subr.bf16.mxu0 0
          %899 = vmatpush1.bf16.msra.mxu0 %v883
          %900 = vmatprep.subr.bf16.mxu0 0
          %901 = vmatpush2.bf16.msra.mxu0 0
          %902 = vmatprep.subr.bf16.mxu0 0
          %903 = vmatpush2.bf16.msra.mxu0 0
          %904 = vmatprep.subr.bf16.mxu0 0
          %905 = vmatpush2.bf16.msra.mxu0 0
          %906 = vmatprep.subr.bf16.mxu0 0
          %907 = vmatpush2.bf16.msra.mxu0 0
          %908 = vmatprep.subr.bf16.mxu0 0
          %909 = vmatpush2.bf16.msra.mxu0 0
          %910 = vmatprep.subr.bf16.mxu0 0
          %911 = vmatpush2.bf16.msra.mxu0 0
          %912 = vmatprep.subr.bf16.mxu0 0
          %913 = vmatpush2.bf16.msra.mxu0 0
          %914 = vmatprep.subr.bf16.mxu0 0
          %915 = vmatpush2.bf16.msra.mxu0 0
          %916 = vmatprep.mubr.bf16.mxu0 0
          %917 = vmatmul.mubr.bf16.gmra.mxu0 %v473
          %v918 = vpop.f32.mrf.mxu0
          %v919 = vadd.f32 %v354, %v918
          %v920 = vpop.f32.mrf.mxu0
          %v921 = vpop.f32.mrf.mxu0
          %v922 = vadd.f32 %v359, %v921
          %v923 = vpop.f32.mrf.mxu0
          %924 = vmatprep.mubr.bf16.mxu0 0
          %925 = vmatmul.mubr.bf16.gmra.mxu0 %v476
          %v926 = vpop.f32.mrf.mxu0
          %v927 = vadd.f32 %v364, %v926
          %v928 = vpop.f32.mrf.mxu0
          %v929 = vpop.f32.mrf.mxu0
          %v930 = vadd.f32 %v369, %v929
          %v931 = vpop.f32.mrf.mxu0
          %932 = vmatprep.mubr.bf16.mxu0 0
          %933 = vmatmul.mubr.bf16.gmra.mxu0 %v479
          %v934 = vpop.f32.mrf.mxu0
          %v935 = vadd.f32 %v374, %v934
          %v936 = vpop.f32.mrf.mxu0
          %v937 = vpop.f32.mrf.mxu0
          %v938 = vadd.f32 %v379, %v937
          %v939 = vpop.f32.mrf.mxu0
          %940 = vmatprep.mubr.bf16.mxu0 0
          %941 = vmatmul.mubr.bf16.gmra.mxu0 %v482
          %v942 = vpop.f32.mrf.mxu0
          %v943 = vadd.f32 %v384, %v942
          %v944 = vpop.f32.mrf.mxu0
          %v945 = vpop.f32.mrf.mxu0
          %v946 = vadd.f32 %v389, %v945
          %v947 = vpop.f32.mrf.mxu0
          %948 = vmatprep.mubr.bf16.mxu0 0
          %949 = vmatmul.mubr.bf16.gmra.mxu0 %v485
          %v950 = vpop.f32.mrf.mxu0
          %v951 = vadd.f32 %v394, %v950
          %v952 = vpop.f32.mrf.mxu0
          %v953 = vpop.f32.mrf.mxu0
          %v954 = vadd.f32 %v399, %v953
          %v955 = vpop.f32.mrf.mxu0
          %956 = vmatprep.mubr.bf16.mxu0 0
          %957 = vmatmul.mubr.bf16.gmra.mxu0 %v488
          %v958 = vpop.f32.mrf.mxu0
          %v959 = vadd.f32 %v404, %v958
          %v960 = vpop.f32.mrf.mxu0
          %v961 = vpop.f32.mrf.mxu0
          %v962 = vadd.f32 %v409, %v961
          %v963 = vpop.f32.mrf.mxu0
          %964 = vmatprep.mubr.bf16.mxu0 0
          %965 = vmatmul.mubr.bf16.gmra.mxu0 %v491
          %v966 = vpop.f32.mrf.mxu0
          %v967 = vadd.f32 %v414, %v966
          %v968 = vpop.f32.mrf.mxu0
          %v969 = vpop.f32.mrf.mxu0
          %v970 = vadd.f32 %v419, %v969
          %v971 = vpop.f32.mrf.mxu0
          %972 = vmatprep.mubr.bf16.mxu0 0
          %973 = vmatmul.mubr.bf16.gmra.mxu0 %v494
          %v974 = vpop.f32.mrf.mxu0
          %v975 = vadd.f32 %v424, %v974
          %v976 = vpop.f32.mrf.mxu0
          %v977 = vpop.f32.mrf.mxu0
          %v978 = vadd.f32 %v429, %v977
          %v979 = vpop.f32.mrf.mxu0
          %980 = vdwg.mxu0
          %v981 = vmax.f32 %v919, 0.0
          %v982 = vmax.f32 %v922, 0.0
          %v983 = vmax.f32 %v927, 0.0
          %v984 = vmax.f32 %v930, 0.0
          %v985 = vmax.f32 %v935, 0.0
          %v986 = vmax.f32 %v938, 0.0
          %v987 = vmax.f32 %v943, 0.0
          %v988 = vmax.f32 %v946, 0.0
          %v989 = vmax.f32 %v951, 0.0
          %v990 = vmax.f32 %v954, 0.0
          %v991 = vmax.f32 %v959, 0.0
          %v992 = vmax.f32 %v962, 0.0
          %v993 = vmax.f32 %v967, 0.0
          %v994 = vmax.f32 %v970, 0.0
          %v995 = vmax.f32 %v975, 0.0
          %v996 = vmax.f32 %v978, 0.0
          %v997 = vsel %vm471, %v981, 0.0
          %998 = vadd.xlane.f32.xlu0 %v997
          %v999 = vpop.xlane.xlu0 %998
          %v1000 = vsel %vm471, %v982, 0.0
          %1001 = vadd.xlane.f32.xlu0 %v1000
          %v1002 = vpop.xlane.xlu0 %1001
          %v1003 = vsel %vm471, %v983, 0.0
          %1004 = vadd.xlane.f32.xlu0 %v1003
          %v1005 = vpop.xlane.xlu0 %1004
          %v1006 = vsel %vm471, %v984, 0.0
          %1007 = vadd.xlane.f32.xlu0 %v1006
          %v1008 = vpop.xlane.xlu0 %1007
          %v1009 = vsel %vm471, %v985, 0.0
          %1010 = vadd.xlane.f32.xlu0 %v1009
          %v1011 = vpop.xlane.xlu0 %1010
          %v1012 = vsel %vm471, %v986, 0.0
          %1013 = vadd.xlane.f32.xlu0 %v1012
          %v1014 = vpop.xlane.xlu0 %1013
          %v1015 = vsel %vm471, %v987, 0.0
          %1016 = vadd.xlane.f32.xlu0 %v1015
          %v1017 = vpop.xlane.xlu0 %1016
          %v1018 = vsel %vm471, %v988, 0.0
          %1019 = vadd.xlane.f32.xlu0 %v1018
          %v1020 = vpop.xlane.xlu0 %1019
          %v1021 = vsel %vm471, %v989, 0.0
          %1022 = vadd.xlane.f32.xlu0 %v1021
          %v1023 = vpop.xlane.xlu0 %1022
          %v1024 = vsel %vm471, %v990, 0.0
          %1025 = vadd.xlane.f32.xlu0 %v1024
          %v1026 = vpop.xlane.xlu0 %1025
          %v1027 = vsel %vm471, %v991, 0.0
          %1028 = vadd.xlane.f32.xlu0 %v1027
          %v1029 = vpop.xlane.xlu0 %1028
          %v1030 = vsel %vm471, %v992, 0.0
          %1031 = vadd.xlane.f32.xlu0 %v1030
          %v1032 = vpop.xlane.xlu0 %1031
          %v1033 = vsel %vm471, %v993, 0.0
          %1034 = vadd.xlane.f32.xlu0 %v1033
          %v1035 = vpop.xlane.xlu0 %1034
          %v1036 = vsel %vm471, %v994, 0.0
          %1037 = vadd.xlane.f32.xlu0 %v1036
          %v1038 = vpop.xlane.xlu0 %1037
          %v1039 = vsel %vm471, %v995, 0.0
          %1040 = vadd.xlane.f32.xlu0 %v1039
          %v1041 = vpop.xlane.xlu0 %1040
          %v1042 = vsel %vm471, %v996, 0.0
          %1043 = vadd.xlane.f32.xlu0 %v1042
          %v1044 = vpop.xlane.xlu0 %1043
          %v1045 = vadd.f32 %v852, %v999
          %v1046 = vadd.f32 %v853, %v1002
          %v1047 = vadd.f32 %v854, %v1005
          %v1048 = vadd.f32 %v855, %v1008
          %v1049 = vadd.f32 %v856, %v1011
          %v1050 = vadd.f32 %v857, %v1014
          %v1051 = vadd.f32 %v858, %v1017
          %v1052 = vadd.f32 %v859, %v1020
          %v1053 = vadd.f32 %v860, %v1023
          %v1054 = vadd.f32 %v861, %v1026
          %v1055 = vadd.f32 %v862, %v1029
          %v1056 = vadd.f32 %v863, %v1032
          %v1057 = vadd.f32 %v864, %v1035
          %v1058 = vadd.f32 %v865, %v1038
          %v1059 = vadd.f32 %v866, %v1041
          %v1060 = vadd.f32 %v867, %v1044
          %v1061 = vrot.slane %v325, 1
          %v1062 = vrot.slane %v328, 2
          %v1063 = vor.u32 %v1061, %v1062
          %1065 = vrot.lane.b32.xlu0 %v323, 127
          %v1066 = vpop.permute.xlu0 %1065
          %1068 = vrot.lane.b32.xlu0 %v331, 126
          %v1069 = vpop.permute.xlu0 %1068
          %v1070 = vsel %vm340, %v1063, %v1066
          %v1073 = vsel %vm342, %v1070, %v1069
          %v1075 = vsel %vm349, %v1073, 0
          %1076 = vmatprep.subr.bf16.mxu0 0
          %1077 = vmatpush1.bf16.msra.mxu0 0
          %1078 = vmatprep.subr.bf16.mxu0 0
          %1079 = vmatpush1.bf16.msra.mxu0 0
          %1080 = vmatprep.subr.bf16.mxu0 0
          %1081 = vmatpush1.bf16.msra.mxu0 0
          %1082 = vmatprep.subr.bf16.mxu0 0
          %1083 = vmatpush1.bf16.msra.mxu0 0
          %1084 = vmatprep.subr.bf16.mxu0 0
          %1085 = vmatpush1.bf16.msra.mxu0 0
          %1086 = vmatprep.subr.bf16.mxu0 0
          %1087 = vmatpush1.bf16.msra.mxu0 0
          %1088 = vmatprep.subr.bf16.mxu0 0
          %1089 = vmatpush1.bf16.msra.mxu0 0
          %1090 = vmatprep.subr.bf16.mxu0 0
          %1091 = vmatpush1.bf16.msra.mxu0 %v1075
          %1092 = vmatprep.subr.bf16.mxu0 0
          %1093 = vmatpush2.bf16.msra.mxu0 0
          %1094 = vmatprep.subr.bf16.mxu0 0
          %1095 = vmatpush2.bf16.msra.mxu0 0
          %1096 = vmatprep.subr.bf16.mxu0 0
          %1097 = vmatpush2.bf16.msra.mxu0 0
          %1098 = vmatprep.subr.bf16.mxu0 0
          %1099 = vmatpush2.bf16.msra.mxu0 0
          %1100 = vmatprep.subr.bf16.mxu0 0
          %1101 = vmatpush2.bf16.msra.mxu0 0
          %1102 = vmatprep.subr.bf16.mxu0 0
          %1103 = vmatpush2.bf16.msra.mxu0 0
          %1104 = vmatprep.subr.bf16.mxu0 0
          %1105 = vmatpush2.bf16.msra.mxu0 0
          %1106 = vmatprep.subr.bf16.mxu0 0
          %1107 = vmatpush2.bf16.msra.mxu0 0
          %1108 = vmatprep.mubr.bf16.mxu0 0
          %1109 = vmatmul.mubr.bf16.gmra.mxu0 %v473
          %v1110 = vpop.f32.mrf.mxu0
          %v1111 = vadd.f32 %v354, %v1110
          %v1112 = vpop.f32.mrf.mxu0
          %v1113 = vpop.f32.mrf.mxu0
          %v1114 = vadd.f32 %v359, %v1113
          %v1115 = vpop.f32.mrf.mxu0
          %1116 = vmatprep.mubr.bf16.mxu0 0
          %1117 = vmatmul.mubr.bf16.gmra.mxu0 %v476
          %v1118 = vpop.f32.mrf.mxu0
          %v1119 = vadd.f32 %v364, %v1118
          %v1120 = vpop.f32.mrf.mxu0
          %v1121 = vpop.f32.mrf.mxu0
          %v1122 = vadd.f32 %v369, %v1121
          %v1123 = vpop.f32.mrf.mxu0
          %1124 = vmatprep.mubr.bf16.mxu0 0
          %1125 = vmatmul.mubr.bf16.gmra.mxu0 %v479
          %v1126 = vpop.f32.mrf.mxu0
          %v1127 = vadd.f32 %v374, %v1126
          %v1128 = vpop.f32.mrf.mxu0
          %v1129 = vpop.f32.mrf.mxu0
          %v1130 = vadd.f32 %v379, %v1129
          %v1131 = vpop.f32.mrf.mxu0
          %1132 = vmatprep.mubr.bf16.mxu0 0
          %1133 = vmatmul.mubr.bf16.gmra.mxu0 %v482
          %v1134 = vpop.f32.mrf.mxu0
          %v1135 = vadd.f32 %v384, %v1134
          %v1136 = vpop.f32.mrf.mxu0
          %v1137 = vpop.f32.mrf.mxu0
          %v1138 = vadd.f32 %v389, %v1137
          %v1139 = vpop.f32.mrf.mxu0
          %1140 = vmatprep.mubr.bf16.mxu0 0
          %1141 = vmatmul.mubr.bf16.gmra.mxu0 %v485
          %v1142 = vpop.f32.mrf.mxu0
          %v1143 = vadd.f32 %v394, %v1142
          %v1144 = vpop.f32.mrf.mxu0
          %v1145 = vpop.f32.mrf.mxu0
          %v1146 = vadd.f32 %v399, %v1145
          %v1147 = vpop.f32.mrf.mxu0
          %1148 = vmatprep.mubr.bf16.mxu0 0
          %1149 = vmatmul.mubr.bf16.gmra.mxu0 %v488
          %v1150 = vpop.f32.mrf.mxu0
          %v1151 = vadd.f32 %v404, %v1150
          %v1152 = vpop.f32.mrf.mxu0
          %v1153 = vpop.f32.mrf.mxu0
          %v1154 = vadd.f32 %v409, %v1153
          %v1155 = vpop.f32.mrf.mxu0
          %1156 = vmatprep.mubr.bf16.mxu0 0
          %1157 = vmatmul.mubr.bf16.gmra.mxu0 %v491
          %v1158 = vpop.f32.mrf.mxu0
          %v1159 = vadd.f32 %v414, %v1158
          %v1160 = vpop.f32.mrf.mxu0
          %v1161 = vpop.f32.mrf.mxu0
          %v1162 = vadd.f32 %v419, %v1161
          %v1163 = vpop.f32.mrf.mxu0
          %1164 = vmatprep.mubr.bf16.mxu0 0
          %1165 = vmatmul.mubr.bf16.gmra.mxu0 %v494
          %v1166 = vpop.f32.mrf.mxu0
          %v1167 = vadd.f32 %v424, %v1166
          %v1168 = vpop.f32.mrf.mxu0
          %v1169 = vpop.f32.mrf.mxu0
          %v1170 = vadd.f32 %v429, %v1169
          %v1171 = vpop.f32.mrf.mxu0
          %1172 = vdwg.mxu0
          %v1173 = vmax.f32 %v1111, 0.0
          %v1174 = vmax.f32 %v1114, 0.0
          %v1175 = vmax.f32 %v1119, 0.0
          %v1176 = vmax.f32 %v1122, 0.0
          %v1177 = vmax.f32 %v1127, 0.0
          %v1178 = vmax.f32 %v1130, 0.0
          %v1179 = vmax.f32 %v1135, 0.0
          %v1180 = vmax.f32 %v1138, 0.0
          %v1181 = vmax.f32 %v1143, 0.0
          %v1182 = vmax.f32 %v1146, 0.0
          %v1183 = vmax.f32 %v1151, 0.0
          %v1184 = vmax.f32 %v1154, 0.0
          %v1185 = vmax.f32 %v1159, 0.0
          %v1186 = vmax.f32 %v1162, 0.0
          %v1187 = vmax.f32 %v1167, 0.0
          %v1188 = vmax.f32 %v1170, 0.0
          %v1189 = vsel %vm471, %v1173, 0.0
          %1190 = vadd.xlane.f32.xlu0 %v1189
          %v1191 = vpop.xlane.xlu0 %1190
          %v1192 = vsel %vm471, %v1174, 0.0
          %1193 = vadd.xlane.f32.xlu0 %v1192
          %v1194 = vpop.xlane.xlu0 %1193
          %v1195 = vsel %vm471, %v1175, 0.0
          %1196 = vadd.xlane.f32.xlu0 %v1195
          %v1197 = vpop.xlane.xlu0 %1196
          %v1198 = vsel %vm471, %v1176, 0.0
          %1199 = vadd.xlane.f32.xlu0 %v1198
          %v1200 = vpop.xlane.xlu0 %1199
          %v1201 = vsel %vm471, %v1177, 0.0
          %1202 = vadd.xlane.f32.xlu0 %v1201
          %v1203 = vpop.xlane.xlu0 %1202
          %v1204 = vsel %vm471, %v1178, 0.0
          %1205 = vadd.xlane.f32.xlu0 %v1204
          %v1206 = vpop.xlane.xlu0 %1205
          %v1207 = vsel %vm471, %v1179, 0.0
          %1208 = vadd.xlane.f32.xlu0 %v1207
          %v1209 = vpop.xlane.xlu0 %1208
          %v1210 = vsel %vm471, %v1180, 0.0
          %1211 = vadd.xlane.f32.xlu0 %v1210
          %v1212 = vpop.xlane.xlu0 %1211
          %v1213 = vsel %vm471, %v1181, 0.0
          %1214 = vadd.xlane.f32.xlu0 %v1213
          %v1215 = vpop.xlane.xlu0 %1214
          %v1216 = vsel %vm471, %v1182, 0.0
          %1217 = vadd.xlane.f32.xlu0 %v1216
          %v1218 = vpop.xlane.xlu0 %1217
          %v1219 = vsel %vm471, %v1183, 0.0
          %1220 = vadd.xlane.f32.xlu0 %v1219
          %v1221 = vpop.xlane.xlu0 %1220
          %v1222 = vsel %vm471, %v1184, 0.0
          %1223 = vadd.xlane.f32.xlu0 %v1222
          %v1224 = vpop.xlane.xlu0 %1223
          %v1225 = vsel %vm471, %v1185, 0.0
          %1226 = vadd.xlane.f32.xlu0 %v1225
          %v1227 = vpop.xlane.xlu0 %1226
          %v1228 = vsel %vm471, %v1186, 0.0
          %1229 = vadd.xlane.f32.xlu0 %v1228
          %v1230 = vpop.xlane.xlu0 %1229
          %v1231 = vsel %vm471, %v1187, 0.0
          %1232 = vadd.xlane.f32.xlu0 %v1231
          %v1233 = vpop.xlane.xlu0 %1232
          %v1234 = vsel %vm471, %v1188, 0.0
          %1235 = vadd.xlane.f32.xlu0 %v1234
          %v1236 = vpop.xlane.xlu0 %1235
          %v1237 = vadd.f32 %v1045, %v1191
          %v1238 = vadd.f32 %v1046, %v1194
          %v1239 = vadd.f32 %v1047, %v1197
          %v1240 = vadd.f32 %v1048, %v1200
          %v1241 = vadd.f32 %v1049, %v1203
          %v1242 = vadd.f32 %v1050, %v1206
          %v1243 = vadd.f32 %v1051, %v1209
          %v1244 = vadd.f32 %v1052, %v1212
          %v1245 = vadd.f32 %v1053, %v1215
          %v1246 = vadd.f32 %v1054, %v1218
          %v1247 = vadd.f32 %v1055, %v1221
          %v1248 = vadd.f32 %v1056, %v1224
          %v1249 = vadd.f32 %v1057, %v1227
          %v1250 = vadd.f32 %v1058, %v1230
          %v1251 = vadd.f32 %v1059, %v1233
          %v1252 = vadd.f32 %v1060, %v1236
          %v1253 = vrot.slane %v323, 2
          %1255 = vrot.lane.b32.xlu0 %v674, 127
          %v1256 = vpop.permute.xlu0 %1255
          %1258 = vrot.lane.b32.xlu0 %v676, 126
          %v1259 = vpop.permute.xlu0 %1258
          %v1260 = vsel %vm340, %v1253, %v1256
          %v1263 = vsel %vm342, %v1260, %v1259
          %v1265 = vsel %vm349, %v1263, 0
          %1266 = vmatprep.subr.bf16.mxu0 0
          %1267 = vmatpush1.bf16.msra.mxu0 0
          %1268 = vmatprep.subr.bf16.mxu0 0
          %1269 = vmatpush1.bf16.msra.mxu0 0
          %1270 = vmatprep.subr.bf16.mxu0 0
          %1271 = vmatpush1.bf16.msra.mxu0 0
          %1272 = vmatprep.subr.bf16.mxu0 0
          %1273 = vmatpush1.bf16.msra.mxu0 0
          %1274 = vmatprep.subr.bf16.mxu0 0
          %1275 = vmatpush1.bf16.msra.mxu0 0
          %1276 = vmatprep.subr.bf16.mxu0 0
          %1277 = vmatpush1.bf16.msra.mxu0 0
          %1278 = vmatprep.subr.bf16.mxu0 0
          %1279 = vmatpush1.bf16.msra.mxu0 0
          %1280 = vmatprep.subr.bf16.mxu0 0
          %1281 = vmatpush1.bf16.msra.mxu0 %v1265
          %1282 = vmatprep.subr.bf16.mxu0 0
          %1283 = vmatpush2.bf16.msra.mxu0 0
          %1284 = vmatprep.subr.bf16.mxu0 0
          %1285 = vmatpush2.bf16.msra.mxu0 0
          %1286 = vmatprep.subr.bf16.mxu0 0
          %1287 = vmatpush2.bf16.msra.mxu0 0
          %1288 = vmatprep.subr.bf16.mxu0 0
          %1289 = vmatpush2.bf16.msra.mxu0 0
          %1290 = vmatprep.subr.bf16.mxu0 0
          %1291 = vmatpush2.bf16.msra.mxu0 0
          %1292 = vmatprep.subr.bf16.mxu0 0
          %1293 = vmatpush2.bf16.msra.mxu0 0
          %1294 = vmatprep.subr.bf16.mxu0 0
          %1295 = vmatpush2.bf16.msra.mxu0 0
          %1296 = vmatprep.subr.bf16.mxu0 0
          %1297 = vmatpush2.bf16.msra.mxu0 0
          %1298 = vmatprep.mubr.bf16.mxu0 0
          %1299 = vmatmul.mubr.bf16.gmra.mxu0 %v473
          %v1300 = vpop.f32.mrf.mxu0
          %v1301 = vadd.f32 %v354, %v1300
          %v1302 = vpop.f32.mrf.mxu0
          %v1303 = vpop.f32.mrf.mxu0
          %v1304 = vadd.f32 %v359, %v1303
          %v1305 = vpop.f32.mrf.mxu0
          %1306 = vmatprep.mubr.bf16.mxu0 0
          %1307 = vmatmul.mubr.bf16.gmra.mxu0 %v476
          %v1308 = vpop.f32.mrf.mxu0
          %v1309 = vadd.f32 %v364, %v1308
          %v1310 = vpop.f32.mrf.mxu0
          %v1311 = vpop.f32.mrf.mxu0
          %v1312 = vadd.f32 %v369, %v1311
          %v1313 = vpop.f32.mrf.mxu0
          %1314 = vmatprep.mubr.bf16.mxu0 0
          %1315 = vmatmul.mubr.bf16.gmra.mxu0 %v479
          %v1316 = vpop.f32.mrf.mxu0
          %v1317 = vadd.f32 %v374, %v1316
          %v1318 = vpop.f32.mrf.mxu0
          %v1319 = vpop.f32.mrf.mxu0
          %v1320 = vadd.f32 %v379, %v1319
          %v1321 = vpop.f32.mrf.mxu0
          %1322 = vmatprep.mubr.bf16.mxu0 0
          %1323 = vmatmul.mubr.bf16.gmra.mxu0 %v482
          %v1324 = vpop.f32.mrf.mxu0
          %v1325 = vadd.f32 %v384, %v1324
          %v1326 = vpop.f32.mrf.mxu0
          %v1327 = vpop.f32.mrf.mxu0
          %v1328 = vadd.f32 %v389, %v1327
          %v1329 = vpop.f32.mrf.mxu0
          %1330 = vmatprep.mubr.bf16.mxu0 0
          %1331 = vmatmul.mubr.bf16.gmra.mxu0 %v485
          %v1332 = vpop.f32.mrf.mxu0
          %v1333 = vadd.f32 %v394, %v1332
          %v1334 = vpop.f32.mrf.mxu0
          %v1335 = vpop.f32.mrf.mxu0
          %v1336 = vadd.f32 %v399, %v1335
          %v1337 = vpop.f32.mrf.mxu0
          %1338 = vmatprep.mubr.bf16.mxu0 0
          %1339 = vmatmul.mubr.bf16.gmra.mxu0 %v488
          %v1340 = vpop.f32.mrf.mxu0
          %v1341 = vadd.f32 %v404, %v1340
          %v1342 = vpop.f32.mrf.mxu0
          %v1343 = vpop.f32.mrf.mxu0
          %v1344 = vadd.f32 %v409, %v1343
          %v1345 = vpop.f32.mrf.mxu0
          %1346 = vmatprep.mubr.bf16.mxu0 0
          %1347 = vmatmul.mubr.bf16.gmra.mxu0 %v491
          %v1348 = vpop.f32.mrf.mxu0
          %v1349 = vadd.f32 %v414, %v1348
          %v1350 = vpop.f32.mrf.mxu0
          %v1351 = vpop.f32.mrf.mxu0
          %v1352 = vadd.f32 %v419, %v1351
          %v1353 = vpop.f32.mrf.mxu0
          %1354 = vmatprep.mubr.bf16.mxu0 0
          %1355 = vmatmul.mubr.bf16.gmra.mxu0 %v494
          %v1356 = vpop.f32.mrf.mxu0
          %v1357 = vadd.f32 %v424, %v1356
          %v1358 = vpop.f32.mrf.mxu0
          %v1359 = vpop.f32.mrf.mxu0
          %v1360 = vadd.f32 %v429, %v1359
          %v1361 = vpop.f32.mrf.mxu0
          %1362 = vdwg.mxu0
          %v1363 = vmax.f32 %v1301, 0.0
          %v1364 = vmax.f32 %v1304, 0.0
          %v1365 = vmax.f32 %v1309, 0.0
          %v1366 = vmax.f32 %v1312, 0.0
          %v1367 = vmax.f32 %v1317, 0.0
          %v1368 = vmax.f32 %v1320, 0.0
          %v1369 = vmax.f32 %v1325, 0.0
          %v1370 = vmax.f32 %v1328, 0.0
          %v1371 = vmax.f32 %v1333, 0.0
          %v1372 = vmax.f32 %v1336, 0.0
          %v1373 = vmax.f32 %v1341, 0.0
          %v1374 = vmax.f32 %v1344, 0.0
          %v1375 = vmax.f32 %v1349, 0.0
          %v1376 = vmax.f32 %v1352, 0.0
          %v1377 = vmax.f32 %v1357, 0.0
          %v1378 = vmax.f32 %v1360, 0.0
          %v1379 = vsel %vm471, %v1363, 0.0
          %1380 = vadd.xlane.f32.xlu0 %v1379
          %v1381 = vpop.xlane.xlu0 %1380
          %v1382 = vsel %vm471, %v1364, 0.0
          %1383 = vadd.xlane.f32.xlu0 %v1382
          %v1384 = vpop.xlane.xlu0 %1383
          %v1385 = vsel %vm471, %v1365, 0.0
          %1386 = vadd.xlane.f32.xlu0 %v1385
          %v1387 = vpop.xlane.xlu0 %1386
          %v1388 = vsel %vm471, %v1366, 0.0
          %1389 = vadd.xlane.f32.xlu0 %v1388
          %v1390 = vpop.xlane.xlu0 %1389
          %v1391 = vsel %vm471, %v1367, 0.0
          %1392 = vadd.xlane.f32.xlu0 %v1391
          %v1393 = vpop.xlane.xlu0 %1392
          %v1394 = vsel %vm471, %v1368, 0.0
          %1395 = vadd.xlane.f32.xlu0 %v1394
          %v1396 = vpop.xlane.xlu0 %1395
          %v1397 = vsel %vm471, %v1369, 0.0
          %1398 = vadd.xlane.f32.xlu0 %v1397
          %v1399 = vpop.xlane.xlu0 %1398
          %v1400 = vsel %vm471, %v1370, 0.0
          %1401 = vadd.xlane.f32.xlu0 %v1400
          %v1402 = vpop.xlane.xlu0 %1401
          %v1403 = vsel %vm471, %v1371, 0.0
          %1404 = vadd.xlane.f32.xlu0 %v1403
          %v1405 = vpop.xlane.xlu0 %1404
          %v1406 = vsel %vm471, %v1372, 0.0
          %1407 = vadd.xlane.f32.xlu0 %v1406
          %v1408 = vpop.xlane.xlu0 %1407
          %v1409 = vsel %vm471, %v1373, 0.0
          %1410 = vadd.xlane.f32.xlu0 %v1409
          %v1411 = vpop.xlane.xlu0 %1410
          %v1412 = vsel %vm471, %v1374, 0.0
          %1413 = vadd.xlane.f32.xlu0 %v1412
          %v1414 = vpop.xlane.xlu0 %1413
          %v1415 = vsel %vm471, %v1375, 0.0
          %1416 = vadd.xlane.f32.xlu0 %v1415
          %v1417 = vpop.xlane.xlu0 %1416
          %v1418 = vsel %vm471, %v1376, 0.0
          %1419 = vadd.xlane.f32.xlu0 %v1418
          %v1420 = vpop.xlane.xlu0 %1419
          %v1421 = vsel %vm471, %v1377, 0.0
          %1422 = vadd.xlane.f32.xlu0 %v1421
          %v1423 = vpop.xlane.xlu0 %1422
          %v1424 = vsel %vm471, %v1378, 0.0
          %1425 = vadd.xlane.f32.xlu0 %v1424
          %v1426 = vpop.xlane.xlu0 %1425
          %v1427 = vadd.f32 %v1237, %v1381
          %v1428 = vadd.f32 %v1238, %v1384
          %v1429 = vadd.f32 %v1239, %v1387
          %v1430 = vadd.f32 %v1240, %v1390
          %v1431 = vadd.f32 %v1241, %v1393
          %v1432 = vadd.f32 %v1242, %v1396
          %v1433 = vadd.f32 %v1243, %v1399
          %v1434 = vadd.f32 %v1244, %v1402
          %v1435 = vadd.f32 %v1245, %v1405
          %v1436 = vadd.f32 %v1246, %v1408
          %v1437 = vadd.f32 %v1247, %v1411
          %v1438 = vadd.f32 %v1248, %v1414
          %v1439 = vadd.f32 %v1249, %v1417
          %v1440 = vadd.f32 %v1250, %v1420
          %v1441 = vadd.f32 %v1251, %v1423
          %v1442 = vadd.f32 %v1252, %v1426
          %v1443 = vrot.slane %v325, 2
          %v1444 = vrot.slane %v328, 3
          %v1445 = vor.u32 %v1443, %v1444
          %1447 = vrot.lane.b32.xlu0 %v868, 127
          %v1448 = vpop.permute.xlu0 %1447
          %1450 = vrot.lane.b32.xlu0 %v871, 126
          %v1451 = vpop.permute.xlu0 %1450
          %v1452 = vsel %vm340, %v1445, %v1448
          %v1455 = vsel %vm342, %v1452, %v1451
          %v1457 = vsel %vm349, %v1455, 0
          %1458 = vmatprep.subr.bf16.mxu0 0
          %1459 = vmatpush1.bf16.msra.mxu0 0
          %1460 = vmatprep.subr.bf16.mxu0 0
          %1461 = vmatpush1.bf16.msra.mxu0 0
          %1462 = vmatprep.subr.bf16.mxu0 0
          %1463 = vmatpush1.bf16.msra.mxu0 0
          %1464 = vmatprep.subr.bf16.mxu0 0
          %1465 = vmatpush1.bf16.msra.mxu0 0
          %1466 = vmatprep.subr.bf16.mxu0 0
          %1467 = vmatpush1.bf16.msra.mxu0 0
          %1468 = vmatprep.subr.bf16.mxu0 0
          %1469 = vmatpush1.bf16.msra.mxu0 0
          %1470 = vmatprep.subr.bf16.mxu0 0
          %1471 = vmatpush1.bf16.msra.mxu0 0
          %1472 = vmatprep.subr.bf16.mxu0 0
          %1473 = vmatpush1.bf16.msra.mxu0 %v1457
          %1474 = vmatprep.subr.bf16.mxu0 0
          %1475 = vmatpush2.bf16.msra.mxu0 0
          %1476 = vmatprep.subr.bf16.mxu0 0
          %1477 = vmatpush2.bf16.msra.mxu0 0
          %1478 = vmatprep.subr.bf16.mxu0 0
          %1479 = vmatpush2.bf16.msra.mxu0 0
          %1480 = vmatprep.subr.bf16.mxu0 0
          %1481 = vmatpush2.bf16.msra.mxu0 0
          %1482 = vmatprep.subr.bf16.mxu0 0
          %1483 = vmatpush2.bf16.msra.mxu0 0
          %1484 = vmatprep.subr.bf16.mxu0 0
          %1485 = vmatpush2.bf16.msra.mxu0 0
          %1486 = vmatprep.subr.bf16.mxu0 0
          %1487 = vmatpush2.bf16.msra.mxu0 0
          %1488 = vmatprep.subr.bf16.mxu0 0
          %1489 = vmatpush2.bf16.msra.mxu0 0
          %1490 = vmatprep.mubr.bf16.mxu0 0
          %1491 = vmatmul.mubr.bf16.gmra.mxu0 %v473
          %v1492 = vpop.f32.mrf.mxu0
          %v1493 = vadd.f32 %v354, %v1492
          %v1494 = vpop.f32.mrf.mxu0
          %v1495 = vpop.f32.mrf.mxu0
          %v1496 = vadd.f32 %v359, %v1495
          %v1497 = vpop.f32.mrf.mxu0
          %1498 = vmatprep.mubr.bf16.mxu0 0
          %1499 = vmatmul.mubr.bf16.gmra.mxu0 %v476
          %v1500 = vpop.f32.mrf.mxu0
          %v1501 = vadd.f32 %v364, %v1500
          %v1502 = vpop.f32.mrf.mxu0
          %v1503 = vpop.f32.mrf.mxu0
          %v1504 = vadd.f32 %v369, %v1503
          %v1505 = vpop.f32.mrf.mxu0
          %1506 = vmatprep.mubr.bf16.mxu0 0
          %1507 = vmatmul.mubr.bf16.gmra.mxu0 %v479
          %v1508 = vpop.f32.mrf.mxu0
          %v1509 = vadd.f32 %v374, %v1508
          %v1510 = vpop.f32.mrf.mxu0
          %v1511 = vpop.f32.mrf.mxu0
          %v1512 = vadd.f32 %v379, %v1511
          %v1513 = vpop.f32.mrf.mxu0
          %1514 = vmatprep.mubr.bf16.mxu0 0
          %1515 = vmatmul.mubr.bf16.gmra.mxu0 %v482
          %v1516 = vpop.f32.mrf.mxu0
          %v1517 = vadd.f32 %v384, %v1516
          %v1518 = vpop.f32.mrf.mxu0
          %v1519 = vpop.f32.mrf.mxu0
          %v1520 = vadd.f32 %v389, %v1519
          %v1521 = vpop.f32.mrf.mxu0
          %1522 = vmatprep.mubr.bf16.mxu0 0
          %1523 = vmatmul.mubr.bf16.gmra.mxu0 %v485
          %v1524 = vpop.f32.mrf.mxu0
          %v1525 = vadd.f32 %v394, %v1524
          %v1526 = vpop.f32.mrf.mxu0
          %v1527 = vpop.f32.mrf.mxu0
          %v1528 = vadd.f32 %v399, %v1527
          %v1529 = vpop.f32.mrf.mxu0
          %1530 = vmatprep.mubr.bf16.mxu0 0
          %1531 = vmatmul.mubr.bf16.gmra.mxu0 %v488
          %v1532 = vpop.f32.mrf.mxu0
          %v1533 = vadd.f32 %v404, %v1532
          %v1534 = vpop.f32.mrf.mxu0
          %v1535 = vpop.f32.mrf.mxu0
          %v1536 = vadd.f32 %v409, %v1535
          %v1537 = vpop.f32.mrf.mxu0
          %1538 = vmatprep.mubr.bf16.mxu0 0
          %1539 = vmatmul.mubr.bf16.gmra.mxu0 %v491
          %v1540 = vpop.f32.mrf.mxu0
          %v1541 = vadd.f32 %v414, %v1540
          %v1542 = vpop.f32.mrf.mxu0
          %v1543 = vpop.f32.mrf.mxu0
          %v1544 = vadd.f32 %v419, %v1543
          %v1545 = vpop.f32.mrf.mxu0
          %1546 = vmatprep.mubr.bf16.mxu0 0
          %1547 = vmatmul.mubr.bf16.gmra.mxu0 %v494
          %v1548 = vpop.f32.mrf.mxu0
          %v1549 = vadd.f32 %v424, %v1548
          %v1550 = vpop.f32.mrf.mxu0
          %v1551 = vpop.f32.mrf.mxu0
          %v1552 = vadd.f32 %v429, %v1551
          %v1553 = vpop.f32.mrf.mxu0
          %1554 = vdwg.mxu0
          %v1555 = vmax.f32 %v1493, 0.0
          %v1556 = vmax.f32 %v1496, 0.0
          %v1557 = vmax.f32 %v1501, 0.0
          %v1558 = vmax.f32 %v1504, 0.0
          %v1559 = vmax.f32 %v1509, 0.0
          %v1560 = vmax.f32 %v1512, 0.0
          %v1561 = vmax.f32 %v1517, 0.0
          %v1562 = vmax.f32 %v1520, 0.0
          %v1563 = vmax.f32 %v1525, 0.0
          %v1564 = vmax.f32 %v1528, 0.0
          %v1565 = vmax.f32 %v1533, 0.0
          %v1566 = vmax.f32 %v1536, 0.0
          %v1567 = vmax.f32 %v1541, 0.0
          %v1568 = vmax.f32 %v1544, 0.0
          %v1569 = vmax.f32 %v1549, 0.0
          %v1570 = vmax.f32 %v1552, 0.0
          %v1571 = vsel %vm471, %v1555, 0.0
          %1572 = vadd.xlane.f32.xlu0 %v1571
          %v1573 = vpop.xlane.xlu0 %1572
          %v1574 = vsel %vm471, %v1556, 0.0
          %1575 = vadd.xlane.f32.xlu0 %v1574
          %v1576 = vpop.xlane.xlu0 %1575
          %v1577 = vsel %vm471, %v1557, 0.0
          %1578 = vadd.xlane.f32.xlu0 %v1577
          %v1579 = vpop.xlane.xlu0 %1578
          %v1580 = vsel %vm471, %v1558, 0.0
          %1581 = vadd.xlane.f32.xlu0 %v1580
          %v1582 = vpop.xlane.xlu0 %1581
          %v1583 = vsel %vm471, %v1559, 0.0
          %1584 = vadd.xlane.f32.xlu0 %v1583
          %v1585 = vpop.xlane.xlu0 %1584
          %v1586 = vsel %vm471, %v1560, 0.0
          %1587 = vadd.xlane.f32.xlu0 %v1586
          %v1588 = vpop.xlane.xlu0 %1587
          %v1589 = vsel %vm471, %v1561, 0.0
          %1590 = vadd.xlane.f32.xlu0 %v1589
          %v1591 = vpop.xlane.xlu0 %1590
          %v1592 = vsel %vm471, %v1562, 0.0
          %1593 = vadd.xlane.f32.xlu0 %v1592
          %v1594 = vpop.xlane.xlu0 %1593
          %v1595 = vsel %vm471, %v1563, 0.0
          %1596 = vadd.xlane.f32.xlu0 %v1595
          %v1597 = vpop.xlane.xlu0 %1596
          %v1598 = vsel %vm471, %v1564, 0.0
          %1599 = vadd.xlane.f32.xlu0 %v1598
          %v1600 = vpop.xlane.xlu0 %1599
          %v1601 = vsel %vm471, %v1565, 0.0
          %1602 = vadd.xlane.f32.xlu0 %v1601
          %v1603 = vpop.xlane.xlu0 %1602
          %v1604 = vsel %vm471, %v1566, 0.0
          %1605 = vadd.xlane.f32.xlu0 %v1604
          %v1606 = vpop.xlane.xlu0 %1605
          %v1607 = vsel %vm471, %v1567, 0.0
          %1608 = vadd.xlane.f32.xlu0 %v1607
          %v1609 = vpop.xlane.xlu0 %1608
          %v1610 = vsel %vm471, %v1568, 0.0
          %1611 = vadd.xlane.f32.xlu0 %v1610
          %v1612 = vpop.xlane.xlu0 %1611
          %v1613 = vsel %vm471, %v1569, 0.0
          %1614 = vadd.xlane.f32.xlu0 %v1613
          %v1615 = vpop.xlane.xlu0 %1614
          %v1616 = vsel %vm471, %v1570, 0.0
          %1617 = vadd.xlane.f32.xlu0 %v1616
          %v1618 = vpop.xlane.xlu0 %1617
          %v1619 = vadd.f32 %v1427, %v1573
          %v1620 = vadd.f32 %v1428, %v1576
          %v1621 = vadd.f32 %v1429, %v1579
          %v1622 = vadd.f32 %v1430, %v1582
          %v1623 = vadd.f32 %v1431, %v1585
          %v1624 = vadd.f32 %v1432, %v1588
          %v1625 = vadd.f32 %v1433, %v1591
          %v1626 = vadd.f32 %v1434, %v1594
          %v1627 = vadd.f32 %v1435, %v1597
          %v1628 = vadd.f32 %v1436, %v1600
          %v1629 = vadd.f32 %v1437, %v1603
          %v1630 = vadd.f32 %v1438, %v1606
          %v1631 = vadd.f32 %v1439, %v1609
          %v1632 = vadd.f32 %v1440, %v1612
          %v1633 = vadd.f32 %v1441, %v1615
          %v1634 = vadd.f32 %v1442, %v1618
          %v1636 = vunpack.c.l.b16 %v320
          %v1637 = vpack.c.b16 %v1636, %v322
          %v1638 = vrot.slane %v1637, 3
          %v1641 = vshrl.u32 %v1637, 16
          %v1643 = vrot.slane %v1641, 1
          %v1644 = vshll.u32 %v1637, 16
          %v1646 = vrot.slane %v1644, 2
          %v1647 = vor.u32 %v1643, %v1646
          %1648 = vrot.lane.b32.xlu0 %v1647, 127
          %v1649 = vpop.permute.xlu0 %1648
          %1651 = vrot.lane.b32.xlu0 %v1637, 126
          %v1652 = vpop.permute.xlu0 %1651
          %v1653 = vsel %vm340, %v1638, %v1649
          %v1656 = vsel %vm342, %v1653, %v1652
          %v1658 = vsel %vm349, %v1656, 0
          %1659 = vmatprep.subr.bf16.mxu0 0
          %1660 = vmatpush1.bf16.msra.mxu0 0
          %1661 = vmatprep.subr.bf16.mxu0 0
          %1662 = vmatpush1.bf16.msra.mxu0 0
          %1663 = vmatprep.subr.bf16.mxu0 0
          %1664 = vmatpush1.bf16.msra.mxu0 0
          %1665 = vmatprep.subr.bf16.mxu0 0
          %1666 = vmatpush1.bf16.msra.mxu0 0
          %1667 = vmatprep.subr.bf16.mxu0 0
          %1668 = vmatpush1.bf16.msra.mxu0 0
          %1669 = vmatprep.subr.bf16.mxu0 0
          %1670 = vmatpush1.bf16.msra.mxu0 0
          %1671 = vmatprep.subr.bf16.mxu0 0
          %1672 = vmatpush1.bf16.msra.mxu0 0
          %1673 = vmatprep.subr.bf16.mxu0 0
          %1674 = vmatpush1.bf16.msra.mxu0 %v1658
          %1675 = vmatprep.subr.bf16.mxu0 0
          %1676 = vmatpush2.bf16.msra.mxu0 0
          %1677 = vmatprep.subr.bf16.mxu0 0
          %1678 = vmatpush2.bf16.msra.mxu0 0
          %1679 = vmatprep.subr.bf16.mxu0 0
          %1680 = vmatpush2.bf16.msra.mxu0 0
          %1681 = vmatprep.subr.bf16.mxu0 0
          %1682 = vmatpush2.bf16.msra.mxu0 0
          %1683 = vmatprep.subr.bf16.mxu0 0
          %1684 = vmatpush2.bf16.msra.mxu0 0
          %1685 = vmatprep.subr.bf16.mxu0 0
          %1686 = vmatpush2.bf16.msra.mxu0 0
          %1687 = vmatprep.subr.bf16.mxu0 0
          %1688 = vmatpush2.bf16.msra.mxu0 0
          %1689 = vmatprep.subr.bf16.mxu0 0
          %1690 = vmatpush2.bf16.msra.mxu0 0
          %1691 = vmatprep.mubr.bf16.mxu0 0
          %1692 = vmatmul.mubr.bf16.gmra.mxu0 %v473
          %v1693 = vpop.f32.mrf.mxu0
          %v1694 = vadd.f32 %v354, %v1693
          %v1695 = vpop.f32.mrf.mxu0
          %v1696 = vpop.f32.mrf.mxu0
          %v1697 = vadd.f32 %v359, %v1696
          %v1698 = vpop.f32.mrf.mxu0
          %1699 = vmatprep.mubr.bf16.mxu0 0
          %1700 = vmatmul.mubr.bf16.gmra.mxu0 %v476
          %v1701 = vpop.f32.mrf.mxu0
          %v1702 = vadd.f32 %v364, %v1701
          %v1703 = vpop.f32.mrf.mxu0
          %v1704 = vpop.f32.mrf.mxu0
          %v1705 = vadd.f32 %v369, %v1704
          %v1706 = vpop.f32.mrf.mxu0
          %1707 = vmatprep.mubr.bf16.mxu0 0
          %1708 = vmatmul.mubr.bf16.gmra.mxu0 %v479
          %v1709 = vpop.f32.mrf.mxu0
          %v1710 = vadd.f32 %v374, %v1709
          %v1711 = vpop.f32.mrf.mxu0
          %v1712 = vpop.f32.mrf.mxu0
          %v1713 = vadd.f32 %v379, %v1712
          %v1714 = vpop.f32.mrf.mxu0
          %1715 = vmatprep.mubr.bf16.mxu0 0
          %1716 = vmatmul.mubr.bf16.gmra.mxu0 %v482
          %v1717 = vpop.f32.mrf.mxu0
          %v1718 = vadd.f32 %v384, %v1717
          %v1719 = vpop.f32.mrf.mxu0
          %v1720 = vpop.f32.mrf.mxu0
          %v1721 = vadd.f32 %v389, %v1720
          %v1722 = vpop.f32.mrf.mxu0
          %1723 = vmatprep.mubr.bf16.mxu0 0
          %1724 = vmatmul.mubr.bf16.gmra.mxu0 %v485
          %v1725 = vpop.f32.mrf.mxu0
          %v1726 = vadd.f32 %v394, %v1725
          %v1727 = vpop.f32.mrf.mxu0
          %v1728 = vpop.f32.mrf.mxu0
          %v1729 = vadd.f32 %v399, %v1728
          %v1730 = vpop.f32.mrf.mxu0
          %1731 = vmatprep.mubr.bf16.mxu0 0
          %1732 = vmatmul.mubr.bf16.gmra.mxu0 %v488
          %v1733 = vpop.f32.mrf.mxu0
          %v1734 = vadd.f32 %v404, %v1733
          %v1735 = vpop.f32.mrf.mxu0
          %v1736 = vpop.f32.mrf.mxu0
          %v1737 = vadd.f32 %v409, %v1736
          %v1738 = vpop.f32.mrf.mxu0
          %1739 = vmatprep.mubr.bf16.mxu0 0
          %1740 = vmatmul.mubr.bf16.gmra.mxu0 %v491
          %v1741 = vpop.f32.mrf.mxu0
          %v1742 = vadd.f32 %v414, %v1741
          %v1743 = vpop.f32.mrf.mxu0
          %v1744 = vpop.f32.mrf.mxu0
          %v1745 = vadd.f32 %v419, %v1744
          %v1746 = vpop.f32.mrf.mxu0
          %1747 = vmatprep.mubr.bf16.mxu0 0
          %1748 = vmatmul.mubr.bf16.gmra.mxu0 %v494
          %v1749 = vpop.f32.mrf.mxu0
          %v1750 = vadd.f32 %v424, %v1749
          %v1751 = vpop.f32.mrf.mxu0
          %v1752 = vpop.f32.mrf.mxu0
          %v1753 = vadd.f32 %v429, %v1752
          %v1754 = vpop.f32.mrf.mxu0
          %1755 = vdwg.mxu0
          %v1756 = vmax.f32 %v1694, 0.0
          %v1757 = vmax.f32 %v1697, 0.0
          %v1758 = vmax.f32 %v1702, 0.0
          %v1759 = vmax.f32 %v1705, 0.0
          %v1760 = vmax.f32 %v1710, 0.0
          %v1761 = vmax.f32 %v1713, 0.0
          %v1762 = vmax.f32 %v1718, 0.0
          %v1763 = vmax.f32 %v1721, 0.0
          %v1764 = vmax.f32 %v1726, 0.0
          %v1765 = vmax.f32 %v1729, 0.0
          %v1766 = vmax.f32 %v1734, 0.0
          %v1767 = vmax.f32 %v1737, 0.0
          %v1768 = vmax.f32 %v1742, 0.0
          %v1769 = vmax.f32 %v1745, 0.0
          %v1770 = vmax.f32 %v1750, 0.0
          %v1771 = vmax.f32 %v1753, 0.0
          %v1772 = vsel %vm471, %v1756, 0.0
          %1773 = vadd.xlane.f32.xlu0 %v1772
          %v1774 = vpop.xlane.xlu0 %1773
          %v1775 = vsel %vm471, %v1757, 0.0
          %1776 = vadd.xlane.f32.xlu0 %v1775
          %v1777 = vpop.xlane.xlu0 %1776
          %v1778 = vsel %vm471, %v1758, 0.0
          %1779 = vadd.xlane.f32.xlu0 %v1778
          %v1780 = vpop.xlane.xlu0 %1779
          %v1781 = vsel %vm471, %v1759, 0.0
          %1782 = vadd.xlane.f32.xlu0 %v1781
          %v1783 = vpop.xlane.xlu0 %1782
          %v1784 = vsel %vm471, %v1760, 0.0
          %1785 = vadd.xlane.f32.xlu0 %v1784
          %v1786 = vpop.xlane.xlu0 %1785
          %v1787 = vsel %vm471, %v1761, 0.0
          %1788 = vadd.xlane.f32.xlu0 %v1787
          %v1789 = vpop.xlane.xlu0 %1788
          %v1790 = vsel %vm471, %v1762, 0.0
          %1791 = vadd.xlane.f32.xlu0 %v1790
          %v1792 = vpop.xlane.xlu0 %1791
          %v1793 = vsel %vm471, %v1763, 0.0
          %1794 = vadd.xlane.f32.xlu0 %v1793
          %v1795 = vpop.xlane.xlu0 %1794
          %v1796 = vsel %vm471, %v1764, 0.0
          %1797 = vadd.xlane.f32.xlu0 %v1796
          %v1798 = vpop.xlane.xlu0 %1797
          %v1799 = vsel %vm471, %v1765, 0.0
          %1800 = vadd.xlane.f32.xlu0 %v1799
          %v1801 = vpop.xlane.xlu0 %1800
          %v1802 = vsel %vm471, %v1766, 0.0
          %1803 = vadd.xlane.f32.xlu0 %v1802
          %v1804 = vpop.xlane.xlu0 %1803
          %v1805 = vsel %vm471, %v1767, 0.0
          %1806 = vadd.xlane.f32.xlu0 %v1805
          %v1807 = vpop.xlane.xlu0 %1806
          %v1808 = vsel %vm471, %v1768, 0.0
          %1809 = vadd.xlane.f32.xlu0 %v1808
          %v1810 = vpop.xlane.xlu0 %1809
          %v1811 = vsel %vm471, %v1769, 0.0
          %1812 = vadd.xlane.f32.xlu0 %v1811
          %v1813 = vpop.xlane.xlu0 %1812
          %v1814 = vsel %vm471, %v1770, 0.0
          %1815 = vadd.xlane.f32.xlu0 %v1814
          %v1816 = vpop.xlane.xlu0 %1815
          %v1817 = vsel %vm471, %v1771, 0.0
          %1818 = vadd.xlane.f32.xlu0 %v1817
          %v1819 = vpop.xlane.xlu0 %1818
          %v1820 = vadd.f32 %v1619, %v1774
          %v1821 = vadd.f32 %v1620, %v1777
          %v1822 = vadd.f32 %v1621, %v1780
          %v1823 = vadd.f32 %v1622, %v1783
          %v1824 = vadd.f32 %v1623, %v1786
          %v1825 = vadd.f32 %v1624, %v1789
          %v1826 = vadd.f32 %v1625, %v1792
          %v1827 = vadd.f32 %v1626, %v1795
          %v1828 = vadd.f32 %v1627, %v1798
          %v1829 = vadd.f32 %v1628, %v1801
          %v1830 = vadd.f32 %v1629, %v1804
          %v1831 = vadd.f32 %v1630, %v1807
          %v1832 = vadd.f32 %v1631, %v1810
          %v1833 = vadd.f32 %v1632, %v1813
          %v1834 = vadd.f32 %v1633, %v1816
          %v1835 = vadd.f32 %v1634, %v1819
          %v1836 = vrot.slane %v1641, 3
          %v1837 = vrot.slane %v1644, 4
          %v1838 = vor.u32 %v1836, %v1837
          %v1840 = vrot.slane %v1637, 2
          %1841 = vrot.lane.b32.xlu0 %v1840, 127
          %v1842 = vpop.permute.xlu0 %1841
          %v1844 = vrot.slane %v1644, 1
          %v1845 = vor.u32 %v1641, %v1844
          %1846 = vrot.lane.b32.xlu0 %v1845, 126
          %v1847 = vpop.permute.xlu0 %1846
          %v1848 = vsel %vm340, %v1838, %v1842
          %v1851 = vsel %vm342, %v1848, %v1847
          %v1853 = vsel %vm349, %v1851, 0
          %1854 = vmatprep.subr.bf16.mxu0 0
          %1855 = vmatpush1.bf16.msra.mxu0 0
          %1856 = vmatprep.subr.bf16.mxu0 0
          %1857 = vmatpush1.bf16.msra.mxu0 0
          %1858 = vmatprep.subr.bf16.mxu0 0
          %1859 = vmatpush1.bf16.msra.mxu0 0
          %1860 = vmatprep.subr.bf16.mxu0 0
          %1861 = vmatpush1.bf16.msra.mxu0 0
          %1862 = vmatprep.subr.bf16.mxu0 0
          %1863 = vmatpush1.bf16.msra.mxu0 0
          %1864 = vmatprep.subr.bf16.mxu0 0
          %1865 = vmatpush1.bf16.msra.mxu0 0
          %1866 = vmatprep.subr.bf16.mxu0 0
          %1867 = vmatpush1.bf16.msra.mxu0 0
          %1868 = vmatprep.subr.bf16.mxu0 0
          %1869 = vmatpush1.bf16.msra.mxu0 %v1853
          %1870 = vmatprep.subr.bf16.mxu0 0
          %1871 = vmatpush2.bf16.msra.mxu0 0
          %1872 = vmatprep.subr.bf16.mxu0 0
          %1873 = vmatpush2.bf16.msra.mxu0 0
          %1874 = vmatprep.subr.bf16.mxu0 0
          %1875 = vmatpush2.bf16.msra.mxu0 0
          %1876 = vmatprep.subr.bf16.mxu0 0
          %1877 = vmatpush2.bf16.msra.mxu0 0
          %1878 = vmatprep.subr.bf16.mxu0 0
          %1879 = vmatpush2.bf16.msra.mxu0 0
          %1880 = vmatprep.subr.bf16.mxu0 0
          %1881 = vmatpush2.bf16.msra.mxu0 0
          %1882 = vmatprep.subr.bf16.mxu0 0
          %1883 = vmatpush2.bf16.msra.mxu0 0
          %1884 = vmatprep.subr.bf16.mxu0 0
          %1885 = vmatpush2.bf16.msra.mxu0 0
          %1886 = vmatprep.mubr.bf16.mxu0 0
          %1887 = vmatmul.mubr.bf16.gmra.mxu0 %v473
          %v1888 = vpop.f32.mrf.mxu0
          %v1889 = vadd.f32 %v354, %v1888
          %v1890 = vpop.f32.mrf.mxu0
          %v1891 = vpop.f32.mrf.mxu0
          %v1892 = vadd.f32 %v359, %v1891
          %v1893 = vpop.f32.mrf.mxu0
          %1894 = vmatprep.mubr.bf16.mxu0 0
          %1895 = vmatmul.mubr.bf16.gmra.mxu0 %v476
          %v1896 = vpop.f32.mrf.mxu0
          %v1897 = vadd.f32 %v364, %v1896
          %v1898 = vpop.f32.mrf.mxu0
          %v1899 = vpop.f32.mrf.mxu0
          %v1900 = vadd.f32 %v369, %v1899
          %v1901 = vpop.f32.mrf.mxu0
          %1902 = vmatprep.mubr.bf16.mxu0 0
          %1903 = vmatmul.mubr.bf16.gmra.mxu0 %v479
          %v1904 = vpop.f32.mrf.mxu0
          %v1905 = vadd.f32 %v374, %v1904
          %v1906 = vpop.f32.mrf.mxu0
          %v1907 = vpop.f32.mrf.mxu0
          %v1908 = vadd.f32 %v379, %v1907
          %v1909 = vpop.f32.mrf.mxu0
          %1910 = vmatprep.mubr.bf16.mxu0 0
          %1911 = vmatmul.mubr.bf16.gmra.mxu0 %v482
          %v1912 = vpop.f32.mrf.mxu0
          %v1913 = vadd.f32 %v384, %v1912
          %v1914 = vpop.f32.mrf.mxu0
          %v1915 = vpop.f32.mrf.mxu0
          %v1916 = vadd.f32 %v389, %v1915
          %v1917 = vpop.f32.mrf.mxu0
          %1918 = vmatprep.mubr.bf16.mxu0 0
          %1919 = vmatmul.mubr.bf16.gmra.mxu0 %v485
          %v1920 = vpop.f32.mrf.mxu0
          %v1921 = vadd.f32 %v394, %v1920
          %v1922 = vpop.f32.mrf.mxu0
          %v1923 = vpop.f32.mrf.mxu0
          %v1924 = vadd.f32 %v399, %v1923
          %v1925 = vpop.f32.mrf.mxu0
          %1926 = vmatprep.mubr.bf16.mxu0 0
          %1927 = vmatmul.mubr.bf16.gmra.mxu0 %v488
          %v1928 = vpop.f32.mrf.mxu0
          %v1929 = vadd.f32 %v404, %v1928
          %v1930 = vpop.f32.mrf.mxu0
          %v1931 = vpop.f32.mrf.mxu0
          %v1932 = vadd.f32 %v409, %v1931
          %v1933 = vpop.f32.mrf.mxu0
          %1934 = vmatprep.mubr.bf16.mxu0 0
          %1935 = vmatmul.mubr.bf16.gmra.mxu0 %v491
          %v1936 = vpop.f32.mrf.mxu0
          %v1937 = vadd.f32 %v414, %v1936
          %v1938 = vpop.f32.mrf.mxu0
          %v1939 = vpop.f32.mrf.mxu0
          %v1940 = vadd.f32 %v419, %v1939
          %v1941 = vpop.f32.mrf.mxu0
          %1942 = vmatprep.mubr.bf16.mxu0 0
          %1943 = vmatmul.mubr.bf16.gmra.mxu0 %v494
          %v1944 = vpop.f32.mrf.mxu0
          %v1945 = vadd.f32 %v424, %v1944
          %v1946 = vpop.f32.mrf.mxu0
          %v1947 = vpop.f32.mrf.mxu0
          %v1948 = vadd.f32 %v429, %v1947
          %v1949 = vpop.f32.mrf.mxu0
          %1950 = vdwg.mxu0
          %v1951 = vmax.f32 %v1889, 0.0
          %v1952 = vmax.f32 %v1892, 0.0
          %v1953 = vmax.f32 %v1897, 0.0
          %v1954 = vmax.f32 %v1900, 0.0
          %v1955 = vmax.f32 %v1905, 0.0
          %v1956 = vmax.f32 %v1908, 0.0
          %v1957 = vmax.f32 %v1913, 0.0
          %v1958 = vmax.f32 %v1916, 0.0
          %v1959 = vmax.f32 %v1921, 0.0
          %v1960 = vmax.f32 %v1924, 0.0
          %v1961 = vmax.f32 %v1929, 0.0
          %v1962 = vmax.f32 %v1932, 0.0
          %v1963 = vmax.f32 %v1937, 0.0
          %v1964 = vmax.f32 %v1940, 0.0
          %v1965 = vmax.f32 %v1945, 0.0
          %v1966 = vmax.f32 %v1948, 0.0
          %v1967 = vsel %vm471, %v1951, 0.0
          %1968 = vadd.xlane.f32.xlu0 %v1967
          %v1969 = vpop.xlane.xlu0 %1968
          %v1970 = vsel %vm471, %v1952, 0.0
          %1971 = vadd.xlane.f32.xlu0 %v1970
          %v1972 = vpop.xlane.xlu0 %1971
          %v1973 = vsel %vm471, %v1953, 0.0
          %1974 = vadd.xlane.f32.xlu0 %v1973
          %v1975 = vpop.xlane.xlu0 %1974
          %v1976 = vsel %vm471, %v1954, 0.0
          %1977 = vadd.xlane.f32.xlu0 %v1976
          %v1978 = vpop.xlane.xlu0 %1977
          %v1979 = vsel %vm471, %v1955, 0.0
          %1980 = vadd.xlane.f32.xlu0 %v1979
          %v1981 = vpop.xlane.xlu0 %1980
          %v1982 = vsel %vm471, %v1956, 0.0
          %1983 = vadd.xlane.f32.xlu0 %v1982
          %v1984 = vpop.xlane.xlu0 %1983
          %v1985 = vsel %vm471, %v1957, 0.0
          %1986 = vadd.xlane.f32.xlu0 %v1985
          %v1987 = vpop.xlane.xlu0 %1986
          %v1988 = vsel %vm471, %v1958, 0.0
          %1989 = vadd.xlane.f32.xlu0 %v1988
          %v1990 = vpop.xlane.xlu0 %1989
          %v1991 = vsel %vm471, %v1959, 0.0
          %1992 = vadd.xlane.f32.xlu0 %v1991
          %v1993 = vpop.xlane.xlu0 %1992
          %v1994 = vsel %vm471, %v1960, 0.0
          %1995 = vadd.xlane.f32.xlu0 %v1994
          %v1996 = vpop.xlane.xlu0 %1995
          %v1997 = vsel %vm471, %v1961, 0.0
          %1998 = vadd.xlane.f32.xlu0 %v1997
          %v1999 = vpop.xlane.xlu0 %1998
          %v2000 = vsel %vm471, %v1962, 0.0
          %2001 = vadd.xlane.f32.xlu0 %v2000
          %v2002 = vpop.xlane.xlu0 %2001
          %v2003 = vsel %vm471, %v1963, 0.0
          %2004 = vadd.xlane.f32.xlu0 %v2003
          %v2005 = vpop.xlane.xlu0 %2004
          %v2006 = vsel %vm471, %v1964, 0.0
          %2007 = vadd.xlane.f32.xlu0 %v2006
          %v2008 = vpop.xlane.xlu0 %2007
          %v2009 = vsel %vm471, %v1965, 0.0
          %2010 = vadd.xlane.f32.xlu0 %v2009
          %v2011 = vpop.xlane.xlu0 %2010
          %v2012 = vsel %vm471, %v1966, 0.0
          %2013 = vadd.xlane.f32.xlu0 %v2012
          %v2014 = vpop.xlane.xlu0 %2013
          %v2015 = vadd.f32 %v1820, %v1969
          %v2016 = vadd.f32 %v1821, %v1972
          %v2017 = vadd.f32 %v1822, %v1975
          %v2018 = vadd.f32 %v1823, %v1978
          %v2019 = vadd.f32 %v1824, %v1981
          %v2020 = vadd.f32 %v1825, %v1984
          %v2021 = vadd.f32 %v1826, %v1987
          %v2022 = vadd.f32 %v1827, %v1990
          %v2023 = vadd.f32 %v1828, %v1993
          %v2024 = vadd.f32 %v1829, %v1996
          %v2025 = vadd.f32 %v1830, %v1999
          %v2026 = vadd.f32 %v1831, %v2002
          %v2027 = vadd.f32 %v1832, %v2005
          %v2028 = vadd.f32 %v1833, %v2008
          %v2029 = vadd.f32 %v1834, %v2011
          %v2030 = vadd.f32 %v1835, %v2014
          %v2031 = vld [vmem:[#allocation2] sm:$0xff]
          %v2032 = vld [vmem:[#allocation2 + $0x8] sm:$0xff]
          %v2033 = vld [vmem:[#allocation2 + $0x10] sm:$0xff]
          %v2034 = vld [vmem:[#allocation2 + $0x18] sm:$0xff]
          %v2035 = vld [vmem:[#allocation2 + $0x20] sm:$0xff]
          %v2036 = vld [vmem:[#allocation2 + $0x28] sm:$0xff]
          %v2037 = vld [vmem:[#allocation2 + $0x30] sm:$0xff]
          %v2038 = vld [vmem:[#allocation2 + $0x38] sm:$0xff]
          %v2039 = vld [vmem:[#allocation2 + $0x40] sm:$0xff]
          %v2040 = vld [vmem:[#allocation2 + $0x48] sm:$0xff]
          %v2041 = vld [vmem:[#allocation2 + $0x50] sm:$0xff]
          %v2042 = vld [vmem:[#allocation2 + $0x58] sm:$0xff]
          %v2043 = vld [vmem:[#allocation2 + $0x60] sm:$0xff]
          %v2044 = vld [vmem:[#allocation2 + $0x68] sm:$0xff]
          %v2045 = vld [vmem:[#allocation2 + $0x70] sm:$0xff]
          %v2046 = vld [vmem:[#allocation2 + $0x78] sm:$0xff]
          %v2047 = vadd.f32 %v2031, %v2015
          %v2048 = vadd.f32 %v2032, %v2016
          %v2049 = vadd.f32 %v2033, %v2017
          %v2050 = vadd.f32 %v2034, %v2018
          %v2051 = vadd.f32 %v2035, %v2019
          %v2052 = vadd.f32 %v2036, %v2020
          %v2053 = vadd.f32 %v2037, %v2021
          %v2054 = vadd.f32 %v2038, %v2022
          %v2055 = vadd.f32 %v2039, %v2023
          %v2056 = vadd.f32 %v2040, %v2024
          %v2057 = vadd.f32 %v2041, %v2025
          %v2058 = vadd.f32 %v2042, %v2026
          %v2059 = vadd.f32 %v2043, %v2027
          %v2060 = vadd.f32 %v2044, %v2028
          %v2061 = vadd.f32 %v2045, %v2029
          %v2062 = vadd.f32 %v2046, %v2030
          %2063 = vst.msk [vmem:[#allocation2] sm:$0xff] %vm259, %v2047
          %2064 = vst.msk [vmem:[#allocation2 + $0x8] sm:$0xff] %vm259, %v2048
          %2065 = vst.msk [vmem:[#allocation2 + $0x10] sm:$0xff] %vm259, %v2049
          %2066 = vst.msk [vmem:[#allocation2 + $0x18] sm:$0xff] %vm259, %v2050
          %2067 = vst.msk [vmem:[#allocation2 + $0x20] sm:$0xff] %vm259, %v2051
          %2068 = vst.msk [vmem:[#allocation2 + $0x28] sm:$0xff] %vm259, %v2052
          %2069 = vst.msk [vmem:[#allocation2 + $0x30] sm:$0xff] %vm259, %v2053
          %2070 = vst.msk [vmem:[#allocation2 + $0x38] sm:$0xff] %vm259, %v2054
          %2071 = vst.msk [vmem:[#allocation2 + $0x40] sm:$0xff] %vm259, %v2055
          %2072 = vst.msk [vmem:[#allocation2 + $0x48] sm:$0xff] %vm259, %v2056
          %2073 = vst.msk [vmem:[#allocation2 + $0x50] sm:$0xff] %vm259, %v2057
          %2074 = vst.msk [vmem:[#allocation2 + $0x58] sm:$0xff] %vm259, %v2058
          %2075 = vst.msk [vmem:[#allocation2 + $0x60] sm:$0xff] %vm259, %v2059
          %2076 = vst.msk [vmem:[#allocation2 + $0x68] sm:$0xff] %vm259, %v2060
          %2077 = vst.msk [vmem:[#allocation2 + $0x70] sm:$0xff] %vm259, %v2061
          %2078 = vst.msk [vmem:[#allocation2 + $0x78] sm:$0xff] %vm259, %v2062
        $region45: #{pneumonia_severity_forward.1} parent=39 // loop_footer
          %s313 = sadd.s32 1, %s309
        $region46: #{pneumonia_severity_forward.1} parent=39 // loop_footer_branch
          %308 = sbr.rel target = $region42
        $region47: #{pneumonia_severity_forward.1} parent=39 // loop_exit
          _
        %v2079 = vld [vmem:[#allocation2] sm:$0xff]
        %v2080 = vld [vmem:[#allocation2 + $0x8] sm:$0xff]
        %v2081 = vld [vmem:[#allocation2 + $0x10] sm:$0xff]
        %v2082 = vld [vmem:[#allocation2 + $0x18] sm:$0xff]
        %v2083 = vld [vmem:[#allocation2 + $0x20] sm:$0xff]
        %v2084 = vld [vmem:[#allocation2 + $0x28] sm:$0xff]
        %v2085 = vld [vmem:[#allocation2 + $0x30] sm:$0xff]
        %v2086 = vld [vmem:[#allocation2 + $0x38] sm:$0xff]
        %v2087 = vld [vmem:[#allocation2 + $0x40] sm:$0xff]
        %v2088 = vld [vmem:[#allocation2 + $0x48] sm:$0xff]
        %v2089 = vld [vmem:[#allocation2 + $0x50] sm:$0xff]
        %v2090 = vld [vmem:[#allocation2 + $0x58] sm:$0xff]
        %v2091 = vld [vmem:[#allocation2 + $0x60] sm:$0xff]
        %v2092 = vld [vmem:[#allocation2 + $0x68] sm:$0xff]
        %v2093 = vld [vmem:[#allocation2 + $0x70] sm:$0xff]
        %v2094 = vld [vmem:[#allocation2 + $0x78] sm:$0xff]
        %v2095 = vmul.f32 %v2079, 0.00390625
        %v2096 = vmul.f32 %v2080, 0.00390625
        %v2097 = vmul.f32 %v2081, 0.00390625
        %v2098 = vmul.f32 %v2082, 0.00390625
        %v2099 = vmul.f32 %v2083, 0.00390625
        %v2100 = vmul.f32 %v2084, 0.00390625
        %v2101 = vmul.f32 %v2085, 0.00390625
        %v2102 = vmul.f32 %v2086, 0.00390625
        %v2103 = vmul.f32 %v2087, 0.00390625
        %v2104 = vmul.f32 %v2088, 0.00390625
        %v2105 = vmul.f32 %v2089, 0.00390625
        %v2106 = vmul.f32 %v2090, 0.00390625
        %v2107 = vmul.f32 %v2091, 0.00390625
        %v2108 = vmul.f32 %v2092, 0.00390625
        %v2109 = vmul.f32 %v2093, 0.00390625
        %v2110 = vmul.f32 %v2094, 0.00390625
        %v2111 = vlaneseq
        %v2112 = vshrl.u32 %v2111, 7
        %v2113 = vadd.s32 %v2112, 8
        %v2114 = vadd.s32 %v2112, 16
        %v2115 = vadd.s32 %v2112, 24
        %v2116 = vadd.s32 %v2112, 32
        %v2117 = vadd.s32 %v2112, 40
        %v2118 = vadd.s32 %v2112, 48
        %v2119 = vadd.s32 %v2112, 56
        %v2120 = vadd.s32 %v2112, 64
        %v2121 = vadd.s32 %v2112, 72
        %v2122 = vadd.s32 %v2112, 80
        %v2123 = vadd.s32 %v2112, 88
        %v2124 = vadd.s32 %v2112, 96
        %v2125 = vadd.s32 %v2112, 104
        %v2126 = vadd.s32 %v2112, 112
        %v2127 = vadd.s32 %v2112, 120
        %v2128 = vlaneseq
        %v2129 = vand.u32 %v2128, 127
        %vm2130 = vcmp.eq.s32.totalorder %v2112, %v2129
        %vm2131 = vcmp.eq.s32.totalorder %v2113, %v2129
        %vm2132 = vcmp.eq.s32.totalorder %v2114, %v2129
        %vm2133 = vcmp.eq.s32.totalorder %v2115, %v2129
        %vm2134 = vcmp.eq.s32.totalorder %v2116, %v2129
        %vm2135 = vcmp.eq.s32.totalorder %v2117, %v2129
        %vm2136 = vcmp.eq.s32.totalorder %v2118, %v2129
        %vm2137 = vcmp.eq.s32.totalorder %v2119, %v2129
        %vm2138 = vcmp.eq.s32.totalorder %v2120, %v2129
        %vm2139 = vcmp.eq.s32.totalorder %v2121, %v2129
        %vm2140 = vcmp.eq.s32.totalorder %v2122, %v2129
        %vm2141 = vcmp.eq.s32.totalorder %v2123, %v2129
        %vm2142 = vcmp.eq.s32.totalorder %v2124, %v2129
        %vm2143 = vcmp.eq.s32.totalorder %v2125, %v2129
        %vm2144 = vcmp.eq.s32.totalorder %v2126, %v2129
        %vm2145 = vcmp.eq.s32.totalorder %v2127, %v2129
        %2147 = vset.pattern.permute.xlu0 0
        %2148 = vperm.xlu0 %2147, %v2095
        %v2149 = vpop.permute.xlu0 %2148
        %2152 = vset.pattern.permute.xlu0 0
        %2153 = vperm.xlu0 %2152, %v2096
        %v2154 = vpop.permute.xlu0 %2153
        %2157 = vset.pattern.permute.xlu0 0
        %2158 = vperm.xlu0 %2157, %v2097
        %v2159 = vpop.permute.xlu0 %2158
        %2162 = vset.pattern.permute.xlu0 0
        %2163 = vperm.xlu0 %2162, %v2098
        %v2164 = vpop.permute.xlu0 %2163
        %2167 = vset.pattern.permute.xlu0 0
        %2168 = vperm.xlu0 %2167, %v2099
        %v2169 = vpop.permute.xlu0 %2168
        %2172 = vset.pattern.permute.xlu0 0
        %2173 = vperm.xlu0 %2172, %v2100
        %v2174 = vpop.permute.xlu0 %2173
        %2177 = vset.pattern.permute.xlu0 0
        %2178 = vperm.xlu0 %2177, %v2101
        %v2179 = vpop.permute.xlu0 %2178
        %2182 = vset.pattern.permute.xlu0 0
        %2183 = vperm.xlu0 %2182, %v2102
        %v2184 = vpop.permute.xlu0 %2183
        %2187 = vset.pattern.permute.xlu0 0
        %2188 = vperm.xlu0 %2187, %v2103
        %v2189 = vpop.permute.xlu0 %2188
        %2192 = vset.pattern.permute.xlu0 0
        %2193 = vperm.xlu0 %2192, %v2104
        %v2194 = vpop.permute.xlu0 %2193
        %2197 = vset.pattern.permute.xlu0 0
        %2198 = vperm.xlu0 %2197, %v2105
        %v2199 = vpop.permute.xlu0 %2198
        %2202 = vset.pattern.permute.xlu0 0
        %2203 = vperm.xlu0 %2202, %v2106
        %v2204 = vpop.permute.xlu0 %2203
        %2207 = vset.pattern.permute.xlu0 0
        %2208 = vperm.xlu0 %2207, %v2107
        %v2209 = vpop.permute.xlu0 %2208
        %2212 = vset.pattern.permute.xlu0 0
        %2213 = vperm.xlu0 %2212, %v2108
        %v2214 = vpop.permute.xlu0 %2213
        %2217 = vset.pattern.permute.xlu0 0
        %2218 = vperm.xlu0 %2217, %v2109
        %v2219 = vpop.permute.xlu0 %2218
        %2222 = vset.pattern.permute.xlu0 0
        %2223 = vperm.xlu0 %2222, %v2110
        %v2224 = vpop.permute.xlu0 %2223
        %v2226 = vsel %vm2130, %v2149, 0.0
        %v2227 = vsel %vm2131, %v2154, 0.0
        %v2228 = vsel %vm2132, %v2159, 0.0
        %v2229 = vsel %vm2133, %v2164, 0.0
        %v2230 = vsel %vm2134, %v2169, 0.0
        %v2231 = vsel %vm2135, %v2174, 0.0
        %v2232 = vsel %vm2136, %v2179, 0.0
        %v2233 = vsel %vm2137, %v2184, 0.0
        %v2234 = vsel %vm2138, %v2189, 0.0
        %v2235 = vsel %vm2139, %v2194, 0.0
        %v2236 = vsel %vm2140, %v2199, 0.0
        %v2237 = vsel %vm2141, %v2204, 0.0
        %v2238 = vsel %vm2142, %v2209, 0.0
        %v2239 = vsel %vm2143, %v2214, 0.0
        %v2240 = vsel %vm2144, %v2219, 0.0
        %v2241 = vsel %vm2145, %v2224, 0.0
        %v2242 = vadd.f32 %v2226, %v2227
        %v2243 = vadd.f32 %v2242, %v2228
        %v2244 = vadd.f32 %v2243, %v2229
        %v2245 = vadd.f32 %v2244, %v2230
        %v2246 = vadd.f32 %v2245, %v2231
        %v2247 = vadd.f32 %v2246, %v2232
        %v2248 = vadd.f32 %v2247, %v2233
        %v2249 = vadd.f32 %v2248, %v2234
        %v2250 = vadd.f32 %v2249, %v2235
        %v2251 = vadd.f32 %v2250, %v2236
        %v2252 = vadd.f32 %v2251, %v2237
        %v2253 = vadd.f32 %v2252, %v2238
        %v2254 = vadd.f32 %v2253, %v2239
        %v2255 = vadd.f32 %v2254, %v2240
        %v2256 = vadd.f32 %v2255, %v2241
        %v2257 = vrot.slane %v2256, 4
        %v2258 = vadd.f32 %v2256, %v2257
        %v2259 = vrot.slane %v2258, 2
        %v2260 = vadd.f32 %v2258, %v2259
        %v2261 = vrot.slane %v2260, 1
        %v2262 = vadd.f32 %v2260, %v2261
        %2263 = vst [vmem:[%s244] sm:$0x1] %v2262
        %v2264 = vld [vmem:[%s3] sm:$0xff]
        %v2265 = vld [vmem:[%s3 + $0x8] sm:$0xff]
        %v2266 = vld [vmem:[%s3 + $0x10] sm:$0xff]
        %v2267 = vld [vmem:[%s3 + $0x18] sm:$0xff]
        %v2268 = vld [vmem:[%s3 + $0x20] sm:$0xff]
        %v2269 = vld [vmem:[%s3 + $0x28] sm:$0xff]
        %v2270 = vld [vmem:[%s3 + $0x30] sm:$0xff]
        %v2271 = vld [vmem:[%s3 + $0x38] sm:$0xff]
        %v2272 = vld [vmem:[%s3 + $0x40] sm:$0xff]
        %v2273 = vld [vmem:[%s3 + $0x48] sm:$0xff]
        %v2274 = vld [vmem:[%s3 + $0x50] sm:$0xff]
        %v2275 = vld [vmem:[%s3 + $0x58] sm:$0xff]
        %v2276 = vld [vmem:[%s3 + $0x60] sm:$0xff]
        %v2277 = vld [vmem:[%s3 + $0x68] sm:$0xff]
        %v2278 = vld [vmem:[%s3 + $0x70] sm:$0xff]
        %v2279 = vld [vmem:[%s3 + $0x78] sm:$0xff]
        %v2280 = vld [vmem:[%s4] sm:$0x1]
        %2281 = vmatprep.subr.mxu0 0.0
        %2282 = vmatpush1.msra.mxu0 %v2279
        %2283 = vmatprep.subr.mxu0 0.0
        %2284 = vmatpush1.msra.mxu0 %v2278
        %2285 = vmatprep.subr.mxu0 0.0
        %2286 = vmatpush1.msra.mxu0 %v2277
        %2287 = vmatprep.subr.mxu0 0.0
        %2288 = vmatpush1.msra.mxu0 %v2276
        %2289 = vmatprep.subr.mxu0 0.0
        %2290 = vmatpush1.msra.mxu0 %v2275
        %2291 = vmatprep.subr.mxu0 0.0
        %2292 = vmatpush1.msra.mxu0 %v2274
        %2293 = vmatprep.subr.mxu0 0.0
        %2294 = vmatpush1.msra.mxu0 %v2273
        %2295 = vmatprep.subr.mxu0 0.0
        %2296 = vmatpush1.msra.mxu0 %v2272
        %2297 = vmatprep.subr.mxu0 0.0
        %2298 = vmatpush1.msra.mxu0 %v2271
        %2299 = vmatprep.subr.mxu0 0.0
        %2300 = vmatpush1.msra.mxu0 %v2270
        %2301 = vmatprep.subr.mxu0 0.0
        %2302 = vmatpush1.msra.mxu0 %v2269
        %2303 = vmatprep.subr.mxu0 0.0
        %2304 = vmatpush1.msra.mxu0 %v2268
        %2305 = vmatprep.subr.mxu0 0.0
        %2306 = vmatpush1.msra.mxu0 %v2267
        %2307 = vmatprep.subr.mxu0 0.0
        %2308 = vmatpush1.msra.mxu0 %v2266
        %2309 = vmatprep.subr.mxu0 0.0
        %2310 = vmatpush1.msra.mxu0 %v2265
        %2311 = vmatprep.subr.mxu0 0.0
        %2312 = vmatpush1.msra.mxu0 %v2264
        %2313 = vmatprep.subr.mxu0 0.0
        %2314 = vmatpush2.msra.mxu0 0.0
        %2315 = vmatprep.subr.mxu0 0.0
        %2316 = vmatpush2.msra.mxu0 0.0
        %2317 = vmatprep.subr.mxu0 0.0
        %2318 = vmatpush2.msra.mxu0 0.0
        %2319 = vmatprep.subr.mxu0 0.0
        %2320 = vmatpush2.msra.mxu0 0.0
        %2321 = vmatprep.subr.mxu0 0.0
        %2322 = vmatpush2.msra.mxu0 0.0
        %2323 = vmatprep.subr.mxu0 0.0
        %2324 = vmatpush2.msra.mxu0 0.0
        %2325 = vmatprep.subr.mxu0 0.0
        %2326 = vmatpush2.msra.mxu0 0.0
        %2327 = vmatprep.subr.mxu0 0.0
        %2328 = vmatpush2.msra.mxu0 0.0
        %2329 = vmatprep.subr.mxu0 0.0
        %2330 = vmatpush2.msra.mxu0 0.0
        %2331 = vmatprep.subr.mxu0 0.0
        %2332 = vmatpush2.msra.mxu0 0.0
        %2333 = vmatprep.subr.mxu0 0.0
        %2334 = vmatpush2.msra.mxu0 0.0
        %2335 = vmatprep.subr.mxu0 0.0
        %2336 = vmatpush2.msra.mxu0 0.0
        %2337 = vmatprep.subr.mxu0 0.0
        %2338 = vmatpush2.msra.mxu0 0.0
        %2339 = vmatprep.subr.mxu0 0.0
        %2340 = vmatpush2.msra.mxu0 0.0
        %2341 = vmatprep.subr.mxu0 0.0
        %2342 = vmatpush2.msra.mxu0 0.0
        %2343 = vmatprep.subr.mxu0 0.0
        %2344 = vmatpush2.msra.mxu0 0.0
        %2345 = vmatprep.mubr.f32.mxu0 0.0
        %2346 = vmatmul.mubr.f32.gmra.mxu0 %v2262
        %v2347 = vpop.f32.mrf.mxu0
        %v2348 = vadd.f32 %v2280, %v2347
        %v2349 = vpop.f32.mrf.mxu0
        %2350 = vdwg.mxu0
        %2351 = vrot.lane.b32.xlu0 %v2348, 112
        %v2352 = vpop.permute.xlu0 %2351
        %s2353 = vtos %v2352
        %s2354 = smul.f32 %s2353, 0.8705248
        %s2355 = sadd.f32 %s2354, 3.4137437
        %s2356 = smax.f32 %s2355, 0.0
        %s2357 = smin.f32 %s2356, 8.0
        %s2358 = smul.f32 %s2353, 0.5484423
        %s2359 = sadd.f32 %s2358, 2.5535977
        %v2360 = vrcp.pop 6.0
        %s2361 = vtos %v2360
        %s2362 = smul.f32 %s2359, %s2361
        %s2363 = smul.f32 %s2362, 8.0
        %s2364 = smax.f32 %s2363, 0.0
        %s2365 = smin.f32 %s2364, 8.0
        %vm2366 = vcmp.eq.s32.totalorder %v2129, 126
        %v2367 = vstv %s2357
        %v2368 = vsel %vm2366, %v2367, %v2348
        %vm2369 = vcmp.eq.s32.totalorder %v2129, 127
        %v2370 = vstv %s2365
        %v2371 = vsel %vm2369, %v2370, %v2368
        %2372 = vst [vmem:[%s257] sm:$0x1] %v2371
        %s2373 = sand.u32 %s139, 1
        %s2374 = scalar_lea.sflag [#allocation4], %s2373
        %s2375 = sand.u32 %s139, 1
        %s2376 = scalar_lea.vmem [#allocation3], %s2375
        %p2377 = scmp.lt.s32.totalorder %s21, 1
        %s2378 = scalar_select %p2377, %s21, 1
        %s2379 = scalar_lea.vmem %s6, %s2378
        // Predicated region
        $region48: #{pneumonia_severity_forward.1} parent=39 // pred_check
          %p2380 = pneg %p149
        $region49: #{pneumonia_severity_forward.1} parent=39 // pred_check_branch
          %2382 = sbr.rel (%p2380) target = $region51
        $region50: #{pneumonia_severity_forward.1} parent=39 // pred_region
          %s2384 = ssub.s32 16, 16
          %2385 = vsyncadd %s2374, %s2384
          %s2386 = smul.addr %s21, 16
          %s2387 = scalar_lea.hbm %s5, %s2386
          %s2389 = sshll.u32 %s2376, 4
          %s2390 = int_to_ptr.vmem [resolvable:$true] %s2389
          %2392 = dma.vmem_to_hbm [thread:$0]  %s2390, 16, %s2387, %s2374
        $region51: #{pneumonia_severity_forward.1} parent=39 // pred_fallthru
          _
        // Predicated region
        $region52: #{pneumonia_severity_forward.1} parent=39 // pred_check
          %p2393 = pneg %p175
        $region53: #{pneumonia_severity_forward.1} parent=39 // pred_check_branch
          %2395 = sbr.rel (%p2393) target = $region55
        $region54: #{pneumonia_severity_forward.1} parent=39 // pred_region
          _
        $region55: #{pneumonia_severity_forward.1} parent=39 // pred_fallthru
          _
      $region40: #{pneumonia_severity_forward.1} parent=5 // pred_fallthru
        _
      %p2396 = scmp.le.s32.totalorder 2, %s16
      // Predicated region
      $region56: #{pneumonia_severity_forward.1} parent=5 // pred_check
        %p2397 = pneg %p2396
      $region57: #{pneumonia_severity_forward.1} parent=5 // pred_check_branch
        %2399 = sbr.rel (%p2397) target = $region59
      $region58: #{pneumonia_severity_forward.1} parent=5 // pred_region
        %s2400 = ssub.s32 %s16, 2
        // Predicated region
        $region60: #{pneumonia_severity_forward.1} parent=58 // pred_check
          %p2401 = pneg %p155
        $region61: #{pneumonia_severity_forward.1} parent=58 // pred_check_branch
          %2403 = sbr.rel (%p2401) target = $region63
        $region62: #{pneumonia_severity_forward.1} parent=58 // pred_region
          %s2404 = sand.u32 %s140, 1
          %s2405 = scalar_lea.sflag [#allocation4], %s2404
          %s2406 = sand.u32 %s140, 1
          %s2407 = scalar_lea.vmem [#allocation3], %s2406
          %2408 = dma.done %s2405, 16
        $region63: #{pneumonia_severity_forward.1} parent=58 // pred_fallthru
          _
        // Predicated region
        $region64: #{pneumonia_severity_forward.1} parent=58 // pred_check
          %p2409 = pneg %p181
        $region65: #{pneumonia_severity_forward.1} parent=58 // pred_check_branch
          %2411 = sbr.rel (%p2409) target = $region67
        $region66: #{pneumonia_severity_forward.1} parent=58 // pred_region
          %p2412 = scmp.lt.s32.totalorder %s22, 1
          %s2413 = scalar_select %p2412, %s22, 1
          %s2414 = scalar_lea.vmem %s6, %s2413
        $region67: #{pneumonia_severity_forward.1} parent=58 // pred_fallthru
          _
      $region59: #{pneumonia_severity_forward.1} parent=5 // pred_fallthru
        _
    $region6: #{pneumonia_severity_forward.1} parent=1 // loop_footer
      %s20 = sadd.s32 1, %s16
    $region7: #{pneumonia_severity_forward.1} parent=1 // loop_footer_branch
      %15 = sbr.rel target = $region3
    $region8: #{pneumonia_severity_forward.1} parent=1 // loop_exit
      _
    %2415 = vsyncpa [#allocation4], 1
    %s2416 = scalar_lea.sflag [#allocation4], 1
    %2417 = vsyncpa %s2416, 1

</llo_original>
